<compile_context>
chip_gen: v7x
topology: tpu7x:2x2x1
jax: 0.10.0
libtpu: 0.0.40
codegen_flags: <defaults>
</compile_context>

<pallas_src>
import jax
import jax.numpy as jnp
from jax import lax
from jax.experimental import pallas as pl
from jax.experimental.pallas import tpu as pltpu


def _round_up(n, m):
    return ((n + m - 1) // m) * m


def _pick_batch_block(batch):
    """Rows per batch block: fill MXU rows, but leave >=2 blocks when the batch
    is large enough so a second TensorCore (v7x megacore) can take half."""
    b8 = _round_up(batch, 8)
    if b8 <= 16:
        bb = b8                              # splitting a tiny batch gains nothing
    elif b8 <= 256:
        bb = _round_up((b8 + 1) // 2, 8)     # two blocks -> both TCs busy on v7x
    else:
        bb = 128                             # many MXU-row-filling blocks
    return bb, _round_up(batch, bb)


def _pick_t_block(seq_len, max_k=8):
    """Timesteps per grid step: divisor of T, <=8, preferring >=2 T-blocks."""
    best = 1
    for k in range(2, max_k + 1):
        if seq_len % k == 0 and (seq_len // k) >= 2:
            best = k
    if best == 1:
        for k in range(2, max_k + 1):
            if seq_len % k == 0:
                best = k
    return best


# ---------------------------------------------------------------------------
# Kernel: one grid step = KT timesteps for one batch block.
# ---------------------------------------------------------------------------
def _lstm_seq_kernel(x_ref, h0_ref, c0_ref, wih_ref, whh_ref, b_ref,
                     wo_ref, bo_ref, out_ref, hseq_ref, cfin_ref, h_sc, c_sc):
    """Block shapes (per grid step):
      x_ref   : (KT, BB, In)   compute dtype   timestep slab
      h0_ref  : (BB, H)  f32   initial hidden state (read only at t-block 0)
      c0_ref  : (BB, H)  f32   initial cell state
      wih_ref : (In, Gtot)     packed W_ih^T   cols [i|f|o|pad | g|pad]
      whh_ref : (H,  Gtot)     packed W_hh^T   same column layout
      b_ref   : (1, Gtot) f32  b_ih + b_hh, packed the same way
      wo_ref  : (H, O)         W_out^T
      bo_ref  : (1, O)   f32   b_out
      out_ref : (KT, BB, O)    per-step controller output
      hseq_ref: (KT, BB, H)    per-step hidden state
      cfin_ref: (BB, H)  f32   final cell state (written once, last T block)
      h_sc/c_sc: (BB, H) f32   VMEM scratch carrying the recurrence
    """
    tb = pl.program_id(1)

    @pl.when(tb == 0)
    def _():
        h_sc[...] = h0_ref[...]
        c_sc[...] = c0_ref[...]

    cd = wih_ref.dtype
    kt, bb, _ = out_ref.shape
    hdim = h_sc.shape[-1]
    gtot = b_ref.shape[-1]
    gp = _round_up(hdim, 128)     # tanh-gate column group width
    sp = gtot - gp                # sigmoid-gate (i,f,o) column group width

    # Hoist (sublane-)broadcast biases out of the unrolled time loop.
    bias = jnp.broadcast_to(b_ref[...], (bb, gtot))
    obias = jnp.broadcast_to(bo_ref[...], (bb, bo_ref.shape[-1]))

    def step(tt, carry):
        h, c = carry                                   # f32 (BB, H)
        x_t = x_ref[tt]                                # (BB, In) compute dtype
        # Two MXU pushes accumulated in f32 (no concat copy).
        g = jnp.dot(x_t, wih_ref[...], preferred_element_type=jnp.float32)
        g = g + jnp.dot(h.astype(cd), whh_ref[...],
                        preferred_element_type=jnp.float32)
        g = g + bias
        sig = jax.nn.sigmoid(g[:, :sp])                # one pass over i|f|o block
        i_g = sig[:, 0:hdim]
        f_g = sig[:, hdim:2 * hdim]
        o_g = sig[:, 2 * hdim:3 * hdim]
        g_g = jnp.tanh(g[:, sp:sp + hdim])
        c_new = f_g * c + i_g * g_g                    # f32 VPU/EUP
        h_new = o_g * jnp.tanh(c_new)
        out = jnp.dot(h_new.astype(cd), wo_ref[...],
                      preferred_element_type=jnp.float32) + obias
        out_ref[tt] = out.astype(out_ref.dtype)
        hseq_ref[tt] = h_new.astype(hseq_ref.dtype)
        return h_new, c_new

    h_fin, c_fin = lax.fori_loop(0, kt, step, (h_sc[...], c_sc[...]),
                                 unroll=True)

    # Carry state to the next T block of this batch block.
    h_sc[...] = h_fin
    c_sc[...] = c_fin

    @pl.when(tb == pl.num_programs(1) - 1)
    def _():
        cfin_ref[...] = c_fin.astype(cfin_ref.dtype)


# ---------------------------------------------------------------------------
# One-time parameter packing (hoisted out of the per-step forward).
# ---------------------------------------------------------------------------
def pack_lstm_controller_params(w_ih, w_hh, b_ih, b_hh, w_out, b_out,
                                compute_dtype=jnp.bfloat16):
    """w_ih:(4H,In) w_hh:(4H,H) b_ih/b_hh:(4H,) w_out:(O,H) b_out:(O,) —
    PyTorch layouts. Returns packed device arrays for the kernel.
    Column layout of the packed gate weights: [i|f|o | pad->Sp | g | pad->Gp]."""
    h4, in_dim = w_ih.shape
    hdim = h4 // 4
    odim = w_out.shape[0]
    sp = _round_up(3 * hdim, 128)   # sigmoid gates i,f,o packed tight together
    gp = _round_up(hdim, 128)       # tanh gate g
    gtot = sp + gp

    wih_t = jnp.asarray(w_ih, jnp.float32).T      # (In, 4H) cols [i|f|g|o]
    whh_t = jnp.asarray(w_hh, jnp.float32).T      # (H, 4H)
    bsum = (jnp.asarray(b_ih, jnp.float32)
            + jnp.asarray(b_hh, jnp.float32))[None, :]   # (1, 4H)

    def regroup(mat):  # (rows, 4H) -> (rows, Gtot)
        rows = mat.shape[0]
        i_g = mat[:, 0 * hdim:1 * hdim]
        f_g = mat[:, 1 * hdim:2 * hdim]
        g_g = mat[:, 2 * hdim:3 * hdim]
        o_g = mat[:, 3 * hdim:4 * hdim]
        out = jnp.zeros((rows, gtot), jnp.float32)
        out = out.at[:, 0:hdim].set(i_g)
        out = out.at[:, hdim:2 * hdim].set(f_g)
        out = out.at[:, 2 * hdim:3 * hdim].set(o_g)
        out = out.at[:, sp:sp + hdim].set(g_g)
        return out

    return {
        "W_ih": regroup(wih_t).astype(compute_dtype),   # (In, Gtot)
        "W_hh": regroup(whh_t).astype(compute_dtype),   # (H, Gtot)
        "b": regroup(bsum),                             # (1, Gtot) f32
        "Wo": jnp.asarray(w_out, jnp.float32).T.astype(compute_dtype),  # (H, O)
        "bo": jnp.asarray(b_out, jnp.float32)[None, :],                 # (1, O)
        "dims": (in_dim, hdim, odim, sp, gp),
        "compute_dtype": compute_dtype,
    }


# ---------------------------------------------------------------------------
# Fused T-step forward (the controller recurrence in one pallas_call).
# ---------------------------------------------------------------------------
def lstm_controller_forward_seq(params, x_seq, h0, c0, out_dtype=jnp.float32):
    """x_seq:(T,B,In)  h0,c0:(B,H) ->
       (out_seq (T,B,O), h_seq (T,B,H), c_T (B,H)).
    out_dtype: dtype for the streamed out/h sequences (use bf16 on v5e to halve
    store-slot / HBM writeback traffic); the recurrent state stays f32."""
    in_dim, hdim, odim, sp, gp = params["dims"]
    cd = params["compute_dtype"]
    gtot = sp + gp
    seq_len, batch, in_x = x_seq.shape
    assert in_x == in_dim

    bb, bp = _pick_batch_block(batch)
    nb = bp // bb
    kt = _pick_t_block(seq_len)
    nt = seq_len // kt

    pad_b = bp - batch
    xp = x_seq.astype(cd)
    h0p = jnp.asarray(h0, jnp.float32)
    c0p = jnp.asarray(c0, jnp.float32)
    if pad_b:
        xp = jnp.pad(xp, ((0, 0), (0, pad_b), (0, 0)))
        h0p = jnp.pad(h0p, ((0, pad_b), (0, 0)))
        c0p = jnp.pad(c0p, ((0, pad_b), (0, 0)))

    # Rough VMEM budget: single-buffered weights + double-buffered streams.
    isz = jnp.dtype(cd).itemsize
    osz = jnp.dtype(out_dtype).itemsize
    w_bytes = (in_dim + hdim) * gtot * isz + hdim * odim * isz + (gtot + odim) * 4
    io_bytes = 2 * kt * bb * (in_dim * isz + (odim + hdim) * osz)
    state_bytes = 8 * bb * hdim * 4
    vmem_limit = int(min(128 << 20, max(32 << 20, 2 * (w_bytes + io_bytes + state_bytes))))

    resident = pl.Buffered(1)   # constant index_map -> no double buffer needed

    out_seq, h_seq, c_fin = pl.pallas_call(
        _lstm_seq_kernel,
        out_shape=(
            jax.ShapeDtypeStruct((seq_len, bp, odim), out_dtype),
            jax.ShapeDtypeStruct((seq_len, bp, hdim), out_dtype),
            jax.ShapeDtypeStruct((bp, hdim), jnp.float32),
        ),
        grid_spec=pltpu.PrefetchScalarGridSpec(
            num_scalar_prefetch=0,
            grid=(nb, nt),
            in_specs=[
                pl.BlockSpec((kt, bb, in_dim), lambda bi, t: (t, bi, 0)),   # x slab
                pl.BlockSpec((bb, hdim), lambda bi, t: (bi, 0)),            # h0
                pl.BlockSpec((bb, hdim), lambda bi, t: (bi, 0)),            # c0
                pl.BlockSpec((in_dim, gtot), lambda bi, t: (0, 0),
                             pipeline_mode=resident),                       # W_ih
                pl.BlockSpec((hdim, gtot), lambda bi, t: (0, 0),
                             pipeline_mode=resident),                       # W_hh
                pl.BlockSpec((1, gtot), lambda bi, t: (0, 0),
                             pipeline_mode=resident),                       # bias
                pl.BlockSpec((hdim, odim), lambda bi, t: (0, 0),
                             pipeline_mode=resident),                       # W_out
                pl.BlockSpec((1, odim), lambda bi, t: (0, 0),
                             pipeline_mode=resident),                       # b_out
            ],
            out_specs=(
                pl.BlockSpec((kt, bb, odim), lambda bi, t: (t, bi, 0)),
                pl.BlockSpec((kt, bb, hdim), lambda bi, t: (t, bi, 0)),
                pl.BlockSpec((bb, hdim), lambda bi, t: (bi, 0)),
            ),
            scratch_shapes=[
                pltpu.VMEM((bb, hdim), jnp.float32),   # h carry
                pltpu.VMEM((bb, hdim), jnp.float32),   # c carry
            ],
        ),
        compiler_params=pltpu.CompilerParams(
            # Batch blocks shard across TensorCores (v7x megacore); the
            # recurrent T-block axis must stay sequential.
            dimension_semantics=("parallel", "arbitrary"),
            vmem_limit_bytes=vmem_limit),
    )(xp, h0p, c0p, params["W_ih"], params["W_hh"], params["b"],
      params["Wo"], params["bo"])

    return out_seq[:, :batch], h_seq[:, :batch], c_fin[:batch]


def lstm_controller_step(params, x, h, c):
    """Matches LSTMController.forward(x): returns (out, h_new) plus c_new."""
    out_seq, h_seq, c_fin = lstm_controller_forward_seq(params, x[None], h, c)
    return out_seq[0], h_seq[0], c_fin


# ---------------------------------------------------------------------------
# Pure-JAX f32 reference (PyTorch LSTMCell semantics, gate order i,f,g,o).
# ---------------------------------------------------------------------------
def _reference_seq(x_seq, h, c, w_ih, w_hh, b_ih, b_hh, w_out, b_out):
    hdim = h.shape[-1]
    outs, hs = [], []
    for t in range(x_seq.shape[0]):
        gates = x_seq[t] @ w_ih.T + b_ih + h @ w_hh.T + b_hh
        i = jax.nn.sigmoid(gates[:, 0 * hdim:1 * hdim])
        f = jax.nn.sigmoid(gates[:, 1 * hdim:2 * hdim])
        g = jnp.tanh(gates[:, 2 * hdim:3 * hdim])
        o = jax.nn.sigmoid(gates[:, 3 * hdim:4 * hdim])
        c = f * c + i * g
        h = o * jnp.tanh(c)
        outs.append(h @ w_out.T + b_out)
        hs.append(h)
    return jnp.stack(outs), jnp.stack(hs), c


if __name__ == "__main__":
    input_size, hidden_size, output_size = 16, 32, 8
    batch, seq_len = 4, 8

    key = jax.random.PRNGKey(0)
    ks = jax.random.split(key, 8)
    bound = 1.0 / (hidden_size ** 0.5)  # PyTorch LSTMCell/Linear uniform init bound

    w_ih = jax.random.uniform(ks[0], (4 * hidden_size, input_size),
                              minval=-bound, maxval=bound, dtype=jnp.float32)
    w_hh = jax.random.uniform(ks[1], (4 * hidden_size, hidden_size),
                              minval=-bound, maxval=bound, dtype=jnp.float32)
    b_ih = jax.random.uniform(ks[2], (4 * hidden_size,),
                              minval=-bound, maxval=bound, dtype=jnp.float32)
    b_hh = jax.random.uniform(ks[3], (4 * hidden_size,),
                              minval=-bound, maxval=bound, dtype=jnp.float32)
    w_out = jax.random.uniform(ks[4], (output_size, hidden_size),
                               minval=-bound, maxval=bound, dtype=jnp.float32)
    b_out = jax.random.uniform(ks[5], (output_size,),
                               minval=-bound, maxval=bound, dtype=jnp.float32)

    x_seq = jax.random.normal(ks[6], (seq_len, batch, input_size), dtype=jnp.float32)
    h0 = jnp.zeros((batch, hidden_size), jnp.float32)   # state after reset(batch)
    c0 = jnp.zeros((batch, hidden_size), jnp.float32)

    out_ref, h_ref, c_ref = _reference_seq(
        x_seq, h0, c0, w_ih, w_hh, b_ih, b_hh, w_out, b_out)

    # --- f32 parameter path: sanity-check the math tightly. ---
    params_f32 = pack_lstm_controller_params(
        w_ih, w_hh, b_ih, b_hh, w_out, b_out, compute_dtype=jnp.float32)
    out_f, h_f, c_f = lstm_controller_forward_seq(params_f32, x_seq, h0, c0)
    jax.block_until_ready((out_f, h_f, c_f))
    assert jnp.allclose(out_f, out_ref, atol=5e-3, rtol=5e-3)
    assert jnp.allclose(h_f, h_ref, atol=5e-3, rtol=5e-3)
    assert jnp.allclose(c_f, c_ref, atol=5e-3, rtol=5e-3)

    # --- bf16 matmul path (performance configuration): looser tolerance. ---
    params_bf = pack_lstm_controller_params(
        w_ih, w_hh, b_ih, b_hh, w_out, b_out, compute_dtype=jnp.bfloat16)
    out_b, h_b, c_b = lstm_controller_forward_seq(params_bf, x_seq, h0, c0)
    jax.block_until_ready((out_b, h_b, c_b))
    assert jnp.allclose(out_b.astype(jnp.float32), out_ref, atol=6e-2, rtol=6e-2)
    assert jnp.allclose(h_b.astype(jnp.float32), h_ref, atol=6e-2, rtol=6e-2)
    assert jnp.allclose(c_b, c_ref, atol=6e-2, rtol=6e-2)

    # --- single-step API, matching LSTMController.forward(x) -> (out, h). ---
    out1, h1, c1 = lstm_controller_step(params_bf, x_seq[0], h0, c0)
    jax.block_until_ready((out1, h1, c1))
    assert jnp.allclose(out1.astype(jnp.float32), out_ref[0], atol=6e-2, rtol=6e-2)
    assert jnp.allclose(h1.astype(jnp.float32), h_ref[0], atol=6e-2, rtol=6e-2)

    print("KERNEL_OK")
</pallas_src>

<mosaic_0001>
module attributes {stable_mosaic.version = 11 : i64} {
  func.func @_lstm_seq_kernel(%arg0: i32, %arg1: i32, %arg2: memref<4x8x16xf32, #tpu.memory_space<vmem>>, %arg3: memref<8x32xf32, #tpu.memory_space<vmem>>, %arg4: memref<8x32xf32, #tpu.memory_space<vmem>>, %arg5: memref<16x256xf32, #tpu.memory_space<vmem>>, %arg6: memref<32x256xf32, #tpu.memory_space<vmem>>, %arg7: memref<1x256xf32, #tpu.memory_space<vmem>>, %arg8: memref<32x8xf32, #tpu.memory_space<vmem>>, %arg9: memref<1x8xf32, #tpu.memory_space<vmem>>, %arg10: memref<4x8x8xf32, #tpu.memory_space<vmem>>, %arg11: memref<4x8x32xf32, #tpu.memory_space<vmem>>, %arg12: memref<8x32xf32, #tpu.memory_space<vmem>>, %arg13: memref<8x32xf32, #tpu.memory_space<vmem>>, %arg14: memref<8x32xf32, #tpu.memory_space<vmem>>) attributes {dimension_semantics = [#tpu.dimension_semantics<parallel>, #tpu.dimension_semantics<arbitrary>], iteration_bounds = array<i64: 1, 2>, scalar_prefetch = 0 : i64, scratch_operands = 2 : i64, tpu.core_type = #tpu.core_type<tc>, window_params = [{transform_indices = @transform_0, window_bounds = array<i64: 4, 8, 16>}, {transform_indices = @transform_1, window_bounds = array<i64: 8, 32>}, {transform_indices = @transform_2, window_bounds = array<i64: 8, 32>}, {pipeline_mode = #tpu.pipeline_mode<synchronous>, transform_indices = @transform_3, window_bounds = array<i64: 16, 256>}, {pipeline_mode = #tpu.pipeline_mode<synchronous>, transform_indices = @transform_4, window_bounds = array<i64: 32, 256>}, {pipeline_mode = #tpu.pipeline_mode<synchronous>, transform_indices = @transform_5, window_bounds = array<i64: 1, 256>}, {pipeline_mode = #tpu.pipeline_mode<synchronous>, transform_indices = @transform_6, window_bounds = array<i64: 32, 8>}, {pipeline_mode = #tpu.pipeline_mode<synchronous>, transform_indices = @transform_7, window_bounds = array<i64: 1, 8>}, {transform_indices = @transform_8, window_bounds = array<i64: 4, 8, 8>}, {transform_indices = @transform_9, window_bounds = array<i64: 4, 8, 32>}, {transform_indices = @transform_10, window_bounds = array<i64: 8, 32>}]} {
    %c0_i32 = arith.constant 0 : i32
    %0 = arith.cmpi eq, %arg1, %c0_i32 : i32
    %1 = arith.extui %0 : i1 to i32
    %c0_i32_0 = arith.constant 0 : i32
    %2 = arith.cmpi ne, %1, %c0_i32_0 : i32
    scf.if %2 {
      %c0_78 = arith.constant 0 : index
      %c0_79 = arith.constant 0 : index
      %160 = vector.load %arg3[%c0_78, %c0_79] : memref<8x32xf32, #tpu.memory_space<vmem>>, vector<8x32xf32>
      %c0_80 = arith.constant 0 : index
      %c0_81 = arith.constant 0 : index
      %161 = vector.load %arg13[%c0_80, %c0_81] : memref<8x32xf32, #tpu.memory_space<vmem>>, vector<8x32xf32>
      tpu.vector_store %arg13[%c0_80, %c0_81], %160 {strides = array<i32>} : memref<8x32xf32, #tpu.memory_space<vmem>>, vector<8x32xf32>,
      %c0_82 = arith.constant 0 : index
      %c0_83 = arith.constant 0 : index
      %162 = vector.load %arg4[%c0_82, %c0_83] : memref<8x32xf32, #tpu.memory_space<vmem>>, vector<8x32xf32>
      %c0_84 = arith.constant 0 : index
      %c0_85 = arith.constant 0 : index
      %163 = vector.load %arg14[%c0_84, %c0_85] : memref<8x32xf32, #tpu.memory_space<vmem>>, vector<8x32xf32>
      tpu.vector_store %arg14[%c0_84, %c0_85], %162 {strides = array<i32>} : memref<8x32xf32, #tpu.memory_space<vmem>>, vector<8x32xf32>,
    } else {
    }
    %c0 = arith.constant 0 : index
    %c0_1 = arith.constant 0 : index
    %3 = vector.load %arg7[%c0, %c0_1] : memref<1x256xf32, #tpu.memory_space<vmem>>, vector<1x256xf32>
    %4 = vector.shape_cast %3 : vector<1x256xf32> to vector<1x256xf32>
    %5 = vector.broadcast %4 : vector<1x256xf32> to vector<8x256xf32>
    %c0_2 = arith.constant 0 : index
    %c0_3 = arith.constant 0 : index
    %6 = vector.load %arg9[%c0_2, %c0_3] : memref<1x8xf32, #tpu.memory_space<vmem>>, vector<1x8xf32>
    %7 = vector.shape_cast %6 : vector<1x8xf32> to vector<1x8xf32>
    %8 = vector.broadcast %7 : vector<1x8xf32> to vector<8x8xf32>
    %c0_4 = arith.constant 0 : index
    %c0_5 = arith.constant 0 : index
    %9 = vector.load %arg13[%c0_4, %c0_5] : memref<8x32xf32, #tpu.memory_space<vmem>>, vector<8x32xf32>
    %c0_6 = arith.constant 0 : index
    %c0_7 = arith.constant 0 : index
    %10 = vector.load %arg14[%c0_6, %c0_7] : memref<8x32xf32, #tpu.memory_space<vmem>>, vector<8x32xf32>
    %c0_i32_8 = arith.constant 0 : i32
    %11 = arith.index_cast %c0_i32_8 : i32 to index
    %c0_9 = arith.constant 0 : index
    %c0_10 = arith.constant 0 : index
    %12 = vector.load %arg2[%11, %c0_9, %c0_10] : memref<4x8x16xf32, #tpu.memory_space<vmem>>, vector<1x8x16xf32>
    %13 = vector.shape_cast %12 : vector<1x8x16xf32> to vector<8x16xf32>
    %c0_11 = arith.constant 0 : index
    %c0_12 = arith.constant 0 : index
    %14 = vector.load %arg5[%c0_11, %c0_12] : memref<16x256xf32, #tpu.memory_space<vmem>>, vector<16x256xf32>
    %cst = arith.constant dense<0.000000e+00> : vector<8x256xf32>
    %15 = tpu.matmul %13, %14, %cst {dimension_numbers = #tpu.dot_dimension_numbers<[1], [0], [0], [1], [0, 0, 1, 1], [], []>} : vector<8x16xf32>, vector<16x256xf32>, vector<8x256xf32> -> vector<8x256xf32>
    %c0_13 = arith.constant 0 : index
    %c0_14 = arith.constant 0 : index
    %16 = vector.load %arg6[%c0_13, %c0_14] : memref<32x256xf32, #tpu.memory_space<vmem>>, vector<32x256xf32>
    %cst_15 = arith.constant dense<0.000000e+00> : vector<8x256xf32>
    %17 = tpu.matmul %9, %16, %cst_15 {dimension_numbers = #tpu.dot_dimension_numbers<[1], [0], [0], [1], [0, 0, 1, 1], [], []>} : vector<8x32xf32>, vector<32x256xf32>, vector<8x256xf32> -> vector<8x256xf32>
    %18 = arith.addf %15, %17 : vector<8x256xf32>
    %19 = arith.addf %18, %5 : vector<8x256xf32>
    %20 = vector.extract_strided_slice %19 {offsets = [0, 0], sizes = [8, 128], strides = [1, 1]} : vector<8x256xf32> to vector<8x128xf32>
    %21 = arith.negf %20 : vector<8x128xf32>
    %22 = math.exp %21 : vector<8x128xf32>
    %cst_16 = arith.constant 1.000000e+00 : f32
    %23 = vector.broadcast %cst_16 : f32 to vector<8x128xf32>
    %24 = arith.addf %23, %22 : vector<8x128xf32>
    %25 = arith.divf %23, %24 : vector<8x128xf32>
    %26 = vector.extract_strided_slice %25 {offsets = [0, 0], sizes = [8, 32], strides = [1, 1]} : vector<8x128xf32> to vector<8x32xf32>
    %27 = vector.extract_strided_slice %25 {offsets = [0, 32], sizes = [8, 32], strides = [1, 1]} : vector<8x128xf32> to vector<8x32xf32>
    %28 = vector.extract_strided_slice %25 {offsets = [0, 64], sizes = [8, 32], strides = [1, 1]} : vector<8x128xf32> to vector<8x32xf32>
    %29 = vector.extract_strided_slice %19 {offsets = [0, 128], sizes = [8, 32], strides = [1, 1]} : vector<8x256xf32> to vector<8x32xf32>
    %30 = math.tanh %29 : vector<8x32xf32>
    %31 = arith.mulf %27, %10 : vector<8x32xf32>
    %32 = arith.mulf %26, %30 : vector<8x32xf32>
    %33 = arith.addf %31, %32 : vector<8x32xf32>
    %34 = math.tanh %33 : vector<8x32xf32>
    %35 = arith.mulf %28, %34 : vector<8x32xf32>
    %c0_17 = arith.constant 0 : index
    %c0_18 = arith.constant 0 : index
    %36 = vector.load %arg8[%c0_17, %c0_18] : memref<32x8xf32, #tpu.memory_space<vmem>>, vector<32x8xf32>
    %cst_19 = arith.constant dense<0.000000e+00> : vector<8x8xf32>
    %37 = tpu.matmul %35, %36, %cst_19 {dimension_numbers = #tpu.dot_dimension_numbers<[1], [0], [0], [1], [0, 0, 1, 1], [], []>} : vector<8x32xf32>, vector<32x8xf32>, vector<8x8xf32> -> vector<8x8xf32>
    %38 = arith.addf %37, %8 : vector<8x8xf32>
    %39 = arith.index_cast %c0_i32_8 : i32 to index
    %c0_20 = arith.constant 0 : index
    %c0_21 = arith.constant 0 : index
    %40 = vector.load %arg10[%39, %c0_20, %c0_21] : memref<4x8x8xf32, #tpu.memory_space<vmem>>, vector<1x8x8xf32>
    %41 = vector.shape_cast %40 : vector<1x8x8xf32> to vector<8x8xf32>
    %42 = vector.shape_cast %38 : vector<8x8xf32> to vector<1x8x8xf32>
    tpu.vector_store %arg10[%39, %c0_20, %c0_21], %42 {strides = array<i32>} : memref<4x8x8xf32, #tpu.memory_space<vmem>>, vector<1x8x8xf32>,
    %43 = arith.index_cast %c0_i32_8 : i32 to index
    %c0_22 = arith.constant 0 : index
    %c0_23 = arith.constant 0 : index
    %44 = vector.load %arg11[%43, %c0_22, %c0_23] : memref<4x8x32xf32, #tpu.memory_space<vmem>>, vector<1x8x32xf32>
    %45 = vector.shape_cast %44 : vector<1x8x32xf32> to vector<8x32xf32>
    %46 = vector.shape_cast %35 : vector<8x32xf32> to vector<1x8x32xf32>
    tpu.vector_store %arg11[%43, %c0_22, %c0_23], %46 {strides = array<i32>} : memref<4x8x32xf32, #tpu.memory_space<vmem>>, vector<1x8x32xf32>,
    %c1_i32 = arith.constant 1 : i32
    %47 = arith.index_cast %c1_i32 : i32 to index
    %c0_24 = arith.constant 0 : index
    %c0_25 = arith.constant 0 : index
    %48 = vector.load %arg2[%47, %c0_24, %c0_25] : memref<4x8x16xf32, #tpu.memory_space<vmem>>, vector<1x8x16xf32>
    %49 = vector.shape_cast %48 : vector<1x8x16xf32> to vector<8x16xf32>
    %c0_26 = arith.constant 0 : index
    %c0_27 = arith.constant 0 : index
    %50 = vector.load %arg5[%c0_26, %c0_27] : memref<16x256xf32, #tpu.memory_space<vmem>>, vector<16x256xf32>
    %cst_28 = arith.constant dense<0.000000e+00> : vector<8x256xf32>
    %51 = tpu.matmul %49, %50, %cst_28 {dimension_numbers = #tpu.dot_dimension_numbers<[1], [0], [0], [1], [0, 0, 1, 1], [], []>} : vector<8x16xf32>, vector<16x256xf32>, vector<8x256xf32> -> vector<8x256xf32>
    %c0_29 = arith.constant 0 : index
    %c0_30 = arith.constant 0 : index
    %52 = vector.load %arg6[%c0_29, %c0_30] : memref<32x256xf32, #tpu.memory_space<vmem>>, vector<32x256xf32>
    %cst_31 = arith.constant dense<0.000000e+00> : vector<8x256xf32>
    %53 = tpu.matmul %35, %52, %cst_31 {dimension_numbers = #tpu.dot_dimension_numbers<[1], [0], [0], [1], [0, 0, 1, 1], [], []>} : vector<8x32xf32>, vector<32x256xf32>, vector<8x256xf32> -> vector<8x256xf32>
    %54 = arith.addf %51, %53 : vector<8x256xf32>
    %55 = arith.addf %54, %5 : vector<8x256xf32>
    %56 = vector.extract_strided_slice %55 {offsets = [0, 0], sizes = [8, 128], strides = [1, 1]} : vector<8x256xf32> to vector<8x128xf32>
    %57 = arith.negf %56 : vector<8x128xf32>
    %58 = math.exp %57 : vector<8x128xf32>
    %cst_32 = arith.constant 1.000000e+00 : f32
    %59 = vector.broadcast %cst_32 : f32 to vector<8x128xf32>
    %60 = arith.addf %59, %58 : vector<8x128xf32>
    %61 = arith.divf %59, %60 : vector<8x128xf32>
    %62 = vector.extract_strided_slice %61 {offsets = [0, 0], sizes = [8, 32], strides = [1, 1]} : vector<8x128xf32> to vector<8x32xf32>
    %63 = vector.extract_strided_slice %61 {offsets = [0, 32], sizes = [8, 32], strides = [1, 1]} : vector<8x128xf32> to vector<8x32xf32>
    %64 = vector.extract_strided_slice %61 {offsets = [0, 64], sizes = [8, 32], strides = [1, 1]} : vector<8x128xf32> to vector<8x32xf32>
    %65 = vector.extract_strided_slice %55 {offsets = [0, 128], sizes = [8, 32], strides = [1, 1]} : vector<8x256xf32> to vector<8x32xf32>
    %66 = math.tanh %65 : vector<8x32xf32>
    %67 = arith.mulf %63, %33 : vector<8x32xf32>
    %68 = arith.mulf %62, %66 : vector<8x32xf32>
    %69 = arith.addf %67, %68 : vector<8x32xf32>
    %70 = math.tanh %69 : vector<8x32xf32>
    %71 = arith.mulf %64, %70 : vector<8x32xf32>
    %c0_33 = arith.constant 0 : index
    %c0_34 = arith.constant 0 : index
    %72 = vector.load %arg8[%c0_33, %c0_34] : memref<32x8xf32, #tpu.memory_space<vmem>>, vector<32x8xf32>
    %cst_35 = arith.constant dense<0.000000e+00> : vector<8x8xf32>
    %73 = tpu.matmul %71, %72, %cst_35 {dimension_numbers = #tpu.dot_dimension_numbers<[1], [0], [0], [1], [0, 0, 1, 1], [], []>} : vector<8x32xf32>, vector<32x8xf32>, vector<8x8xf32> -> vector<8x8xf32>
    %74 = arith.addf %73, %8 : vector<8x8xf32>
    %75 = arith.index_cast %c1_i32 : i32 to index
    %c0_36 = arith.constant 0 : index
    %c0_37 = arith.constant 0 : index
    %76 = vector.load %arg10[%75, %c0_36, %c0_37] : memref<4x8x8xf32, #tpu.memory_space<vmem>>, vector<1x8x8xf32>
    %77 = vector.shape_cast %76 : vector<1x8x8xf32> to vector<8x8xf32>
    %78 = vector.shape_cast %74 : vector<8x8xf32> to vector<1x8x8xf32>
    tpu.vector_store %arg10[%75, %c0_36, %c0_37], %78 {strides = array<i32>} : memref<4x8x8xf32, #tpu.memory_space<vmem>>, vector<1x8x8xf32>,
    %79 = arith.index_cast %c1_i32 : i32 to index
    %c0_38 = arith.constant 0 : index
    %c0_39 = arith.constant 0 : index
    %80 = vector.load %arg11[%79, %c0_38, %c0_39] : memref<4x8x32xf32, #tpu.memory_space<vmem>>, vector<1x8x32xf32>
    %81 = vector.shape_cast %80 : vector<1x8x32xf32> to vector<8x32xf32>
    %82 = vector.shape_cast %71 : vector<8x32xf32> to vector<1x8x32xf32>
    tpu.vector_store %arg11[%79, %c0_38, %c0_39], %82 {strides = array<i32>} : memref<4x8x32xf32, #tpu.memory_space<vmem>>, vector<1x8x32xf32>,
    %c2_i32 = arith.constant 2 : i32
    %83 = arith.index_cast %c2_i32 : i32 to index
    %c0_40 = arith.constant 0 : index
    %c0_41 = arith.constant 0 : index
    %84 = vector.load %arg2[%83, %c0_40, %c0_41] : memref<4x8x16xf32, #tpu.memory_space<vmem>>, vector<1x8x16xf32>
    %85 = vector.shape_cast %84 : vector<1x8x16xf32> to vector<8x16xf32>
    %c0_42 = arith.constant 0 : index
    %c0_43 = arith.constant 0 : index
    %86 = vector.load %arg5[%c0_42, %c0_43] : memref<16x256xf32, #tpu.memory_space<vmem>>, vector<16x256xf32>
    %cst_44 = arith.constant dense<0.000000e+00> : vector<8x256xf32>
    %87 = tpu.matmul %85, %86, %cst_44 {dimension_numbers = #tpu.dot_dimension_numbers<[1], [0], [0], [1], [0, 0, 1, 1], [], []>} : vector<8x16xf32>, vector<16x256xf32>, vector<8x256xf32> -> vector<8x256xf32>
    %c0_45 = arith.constant 0 : index
    %c0_46 = arith.constant 0 : index
    %88 = vector.load %arg6[%c0_45, %c0_46] : memref<32x256xf32, #tpu.memory_space<vmem>>, vector<32x256xf32>
    %cst_47 = arith.constant dense<0.000000e+00> : vector<8x256xf32>
    %89 = tpu.matmul %71, %88, %cst_47 {dimension_numbers = #tpu.dot_dimension_numbers<[1], [0], [0], [1], [0, 0, 1, 1], [], []>} : vector<8x32xf32>, vector<32x256xf32>, vector<8x256xf32> -> vector<8x256xf32>
    %90 = arith.addf %87, %89 : vector<8x256xf32>
    %91 = arith.addf %90, %5 : vector<8x256xf32>
    %92 = vector.extract_strided_slice %91 {offsets = [0, 0], sizes = [8, 128], strides = [1, 1]} : vector<8x256xf32> to vector<8x128xf32>
    %93 = arith.negf %92 : vector<8x128xf32>
    %94 = math.exp %93 : vector<8x128xf32>
    %cst_48 = arith.constant 1.000000e+00 : f32
    %95 = vector.broadcast %cst_48 : f32 to vector<8x128xf32>
    %96 = arith.addf %95, %94 : vector<8x128xf32>
    %97 = arith.divf %95, %96 : vector<8x128xf32>
    %98 = vector.extract_strided_slice %97 {offsets = [0, 0], sizes = [8, 32], strides = [1, 1]} : vector<8x128xf32> to vector<8x32xf32>
    %99 = vector.extract_strided_slice %97 {offsets = [0, 32], sizes = [8, 32], strides = [1, 1]} : vector<8x128xf32> to vector<8x32xf32>
    %100 = vector.extract_strided_slice %97 {offsets = [0, 64], sizes = [8, 32], strides = [1, 1]} : vector<8x128xf32> to vector<8x32xf32>
    %101 = vector.extract_strided_slice %91 {offsets = [0, 128], sizes = [8, 32], strides = [1, 1]} : vector<8x256xf32> to vector<8x32xf32>
    %102 = math.tanh %101 : vector<8x32xf32>
    %103 = arith.mulf %99, %69 : vector<8x32xf32>
    %104 = arith.mulf %98, %102 : vector<8x32xf32>
    %105 = arith.addf %103, %104 : vector<8x32xf32>
    %106 = math.tanh %105 : vector<8x32xf32>
    %107 = arith.mulf %100, %106 : vector<8x32xf32>
    %c0_49 = arith.constant 0 : index
    %c0_50 = arith.constant 0 : index
    %108 = vector.load %arg8[%c0_49, %c0_50] : memref<32x8xf32, #tpu.memory_space<vmem>>, vector<32x8xf32>
    %cst_51 = arith.constant dense<0.000000e+00> : vector<8x8xf32>
    %109 = tpu.matmul %107, %108, %cst_51 {dimension_numbers = #tpu.dot_dimension_numbers<[1], [0], [0], [1], [0, 0, 1, 1], [], []>} : vector<8x32xf32>, vector<32x8xf32>, vector<8x8xf32> -> vector<8x8xf32>
    %110 = arith.addf %109, %8 : vector<8x8xf32>
    %111 = arith.index_cast %c2_i32 : i32 to index
    %c0_52 = arith.constant 0 : index
    %c0_53 = arith.constant 0 : index
    %112 = vector.load %arg10[%111, %c0_52, %c0_53] : memref<4x8x8xf32, #tpu.memory_space<vmem>>, vector<1x8x8xf32>
    %113 = vector.shape_cast %112 : vector<1x8x8xf32> to vector<8x8xf32>
    %114 = vector.shape_cast %110 : vector<8x8xf32> to vector<1x8x8xf32>
    tpu.vector_store %arg10[%111, %c0_52, %c0_53], %114 {strides = array<i32>} : memref<4x8x8xf32, #tpu.memory_space<vmem>>, vector<1x8x8xf32>,
    %115 = arith.index_cast %c2_i32 : i32 to index
    %c0_54 = arith.constant 0 : index
    %c0_55 = arith.constant 0 : index
    %116 = vector.load %arg11[%115, %c0_54, %c0_55] : memref<4x8x32xf32, #tpu.memory_space<vmem>>, vector<1x8x32xf32>
    %117 = vector.shape_cast %116 : vector<1x8x32xf32> to vector<8x32xf32>
    %118 = vector.shape_cast %107 : vector<8x32xf32> to vector<1x8x32xf32>
    tpu.vector_store %arg11[%115, %c0_54, %c0_55], %118 {strides = array<i32>} : memref<4x8x32xf32, #tpu.memory_space<vmem>>, vector<1x8x32xf32>,
    %c3_i32 = arith.constant 3 : i32
    %119 = arith.index_cast %c3_i32 : i32 to index
    %c0_56 = arith.constant 0 : index
    %c0_57 = arith.constant 0 : index
    %120 = vector.load %arg2[%119, %c0_56, %c0_57] : memref<4x8x16xf32, #tpu.memory_space<vmem>>, vector<1x8x16xf32>
    %121 = vector.shape_cast %120 : vector<1x8x16xf32> to vector<8x16xf32>
    %c0_58 = arith.constant 0 : index
    %c0_59 = arith.constant 0 : index
    %122 = vector.load %arg5[%c0_58, %c0_59] : memref<16x256xf32, #tpu.memory_space<vmem>>, vector<16x256xf32>
    %cst_60 = arith.constant dense<0.000000e+00> : vector<8x256xf32>
    %123 = tpu.matmul %121, %122, %cst_60 {dimension_numbers = #tpu.dot_dimension_numbers<[1], [0], [0], [1], [0, 0, 1, 1], [], []>} : vector<8x16xf32>, vector<16x256xf32>, vector<8x256xf32> -> vector<8x256xf32>
    %c0_61 = arith.constant 0 : index
    %c0_62 = arith.constant 0 : index
    %124 = vector.load %arg6[%c0_61, %c0_62] : memref<32x256xf32, #tpu.memory_space<vmem>>, vector<32x256xf32>
    %cst_63 = arith.constant dense<0.000000e+00> : vector<8x256xf32>
    %125 = tpu.matmul %107, %124, %cst_63 {dimension_numbers = #tpu.dot_dimension_numbers<[1], [0], [0], [1], [0, 0, 1, 1], [], []>} : vector<8x32xf32>, vector<32x256xf32>, vector<8x256xf32> -> vector<8x256xf32>
    %126 = arith.addf %123, %125 : vector<8x256xf32>
    %127 = arith.addf %126, %5 : vector<8x256xf32>
    %128 = vector.extract_strided_slice %127 {offsets = [0, 0], sizes = [8, 128], strides = [1, 1]} : vector<8x256xf32> to vector<8x128xf32>
    %129 = arith.negf %128 : vector<8x128xf32>
    %130 = math.exp %129 : vector<8x128xf32>
    %cst_64 = arith.constant 1.000000e+00 : f32
    %131 = vector.broadcast %cst_64 : f32 to vector<8x128xf32>
    %132 = arith.addf %131, %130 : vector<8x128xf32>
    %133 = arith.divf %131, %132 : vector<8x128xf32>
    %134 = vector.extract_strided_slice %133 {offsets = [0, 0], sizes = [8, 32], strides = [1, 1]} : vector<8x128xf32> to vector<8x32xf32>
    %135 = vector.extract_strided_slice %133 {offsets = [0, 32], sizes = [8, 32], strides = [1, 1]} : vector<8x128xf32> to vector<8x32xf32>
    %136 = vector.extract_strided_slice %133 {offsets = [0, 64], sizes = [8, 32], strides = [1, 1]} : vector<8x128xf32> to vector<8x32xf32>
    %137 = vector.extract_strided_slice %127 {offsets = [0, 128], sizes = [8, 32], strides = [1, 1]} : vector<8x256xf32> to vector<8x32xf32>
    %138 = math.tanh %137 : vector<8x32xf32>
    %139 = arith.mulf %135, %105 : vector<8x32xf32>
    %140 = arith.mulf %134, %138 : vector<8x32xf32>
    %141 = arith.addf %139, %140 : vector<8x32xf32>
    %142 = math.tanh %141 : vector<8x32xf32>
    %143 = arith.mulf %136, %142 : vector<8x32xf32>
    %c0_65 = arith.constant 0 : index
    %c0_66 = arith.constant 0 : index
    %144 = vector.load %arg8[%c0_65, %c0_66] : memref<32x8xf32, #tpu.memory_space<vmem>>, vector<32x8xf32>
    %cst_67 = arith.constant dense<0.000000e+00> : vector<8x8xf32>
    %145 = tpu.matmul %143, %144, %cst_67 {dimension_numbers = #tpu.dot_dimension_numbers<[1], [0], [0], [1], [0, 0, 1, 1], [], []>} : vector<8x32xf32>, vector<32x8xf32>, vector<8x8xf32> -> vector<8x8xf32>
    %146 = arith.addf %145, %8 : vector<8x8xf32>
    %147 = arith.index_cast %c3_i32 : i32 to index
    %c0_68 = arith.constant 0 : index
    %c0_69 = arith.constant 0 : index
    %148 = vector.load %arg10[%147, %c0_68, %c0_69] : memref<4x8x8xf32, #tpu.memory_space<vmem>>, vector<1x8x8xf32>
    %149 = vector.shape_cast %148 : vector<1x8x8xf32> to vector<8x8xf32>
    %150 = vector.shape_cast %146 : vector<8x8xf32> to vector<1x8x8xf32>
    tpu.vector_store %arg10[%147, %c0_68, %c0_69], %150 {strides = array<i32>} : memref<4x8x8xf32, #tpu.memory_space<vmem>>, vector<1x8x8xf32>,
    %151 = arith.index_cast %c3_i32 : i32 to index
    %c0_70 = arith.constant 0 : index
    %c0_71 = arith.constant 0 : index
    %152 = vector.load %arg11[%151, %c0_70, %c0_71] : memref<4x8x32xf32, #tpu.memory_space<vmem>>, vector<1x8x32xf32>
    %153 = vector.shape_cast %152 : vector<1x8x32xf32> to vector<8x32xf32>
    %154 = vector.shape_cast %143 : vector<8x32xf32> to vector<1x8x32xf32>
    tpu.vector_store %arg11[%151, %c0_70, %c0_71], %154 {strides = array<i32>} : memref<4x8x32xf32, #tpu.memory_space<vmem>>, vector<1x8x32xf32>,
    %c4_i32 = arith.constant 4 : i32
    %c0_72 = arith.constant 0 : index
    %c0_73 = arith.constant 0 : index
    %155 = vector.load %arg13[%c0_72, %c0_73] : memref<8x32xf32, #tpu.memory_space<vmem>>, vector<8x32xf32>
    tpu.vector_store %arg13[%c0_72, %c0_73], %143 {strides = array<i32>} : memref<8x32xf32, #tpu.memory_space<vmem>>, vector<8x32xf32>,
    %c0_74 = arith.constant 0 : index
    %c0_75 = arith.constant 0 : index
    %156 = vector.load %arg14[%c0_74, %c0_75] : memref<8x32xf32, #tpu.memory_space<vmem>>, vector<8x32xf32>
    tpu.vector_store %arg14[%c0_74, %c0_75], %141 {strides = array<i32>} : memref<8x32xf32, #tpu.memory_space<vmem>>, vector<8x32xf32>,
    %c1_i32_76 = arith.constant 1 : i32
    %157 = arith.cmpi eq, %arg1, %c1_i32_76 : i32
    %158 = arith.extui %157 : i1 to i32
    %c0_i32_77 = arith.constant 0 : i32
    %159 = arith.cmpi ne, %158, %c0_i32_77 : i32
    scf.if %159 {
      %c0_78 = arith.constant 0 : index
      %c0_79 = arith.constant 0 : index
      %160 = vector.load %arg12[%c0_78, %c0_79] : memref<8x32xf32, #tpu.memory_space<vmem>>, vector<8x32xf32>
      tpu.vector_store %arg12[%c0_78, %c0_79], %141 {strides = array<i32>} : memref<8x32xf32, #tpu.memory_space<vmem>>, vector<8x32xf32>,
    } else {
    }
    return
  }
  func.func @transform_0(%arg0: i32, %arg1: i32) -> (i32, i32, i32) {
    %c0_i32 = arith.constant 0 : i32
    %c0_i32_0 = arith.constant 0 : i32
    return %arg1, %arg0, %c0_i32 : i32, i32, i32
  }
  func.func @transform_1(%arg0: i32, %arg1: i32) -> (i32, i32) {
    %c0_i32 = arith.constant 0 : i32
    %c0_i32_0 = arith.constant 0 : i32
    return %arg0, %c0_i32 : i32, i32
  }
  func.func @transform_2(%arg0: i32, %arg1: i32) -> (i32, i32) {
    %c0_i32 = arith.constant 0 : i32
    %c0_i32_0 = arith.constant 0 : i32
    return %arg0, %c0_i32 : i32, i32
  }
  func.func @transform_3(%arg0: i32, %arg1: i32) -> (i32, i32) {
    %c0_i32 = arith.constant 0 : i32
    %c0_i32_0 = arith.constant 0 : i32
    %c0_i32_1 = arith.constant 0 : i32
    return %c0_i32, %c0_i32_0 : i32, i32
  }
  func.func @transform_4(%arg0: i32, %arg1: i32) -> (i32, i32) {
    %c0_i32 = arith.constant 0 : i32
    %c0_i32_0 = arith.constant 0 : i32
    %c0_i32_1 = arith.constant 0 : i32
    return %c0_i32, %c0_i32_0 : i32, i32
  }
  func.func @transform_5(%arg0: i32, %arg1: i32) -> (i32, i32) {
    %c0_i32 = arith.constant 0 : i32
    %c0_i32_0 = arith.constant 0 : i32
    %c0_i32_1 = arith.constant 0 : i32
    return %c0_i32, %c0_i32_0 : i32, i32
  }
  func.func @transform_6(%arg0: i32, %arg1: i32) -> (i32, i32) {
    %c0_i32 = arith.constant 0 : i32
    %c0_i32_0 = arith.constant 0 : i32
    %c0_i32_1 = arith.constant 0 : i32
    return %c0_i32, %c0_i32_0 : i32, i32
  }
  func.func @transform_7(%arg0: i32, %arg1: i32) -> (i32, i32) {
    %c0_i32 = arith.constant 0 : i32
    %c0_i32_0 = arith.constant 0 : i32
    %c0_i32_1 = arith.constant 0 : i32
    return %c0_i32, %c0_i32_0 : i32, i32
  }
  func.func @transform_8(%arg0: i32, %arg1: i32) -> (i32, i32, i32) {
    %c0_i32 = arith.constant 0 : i32
    %c0_i32_0 = arith.constant 0 : i32
    return %arg1, %arg0, %c0_i32 : i32, i32, i32
  }
  func.func @transform_9(%arg0: i32, %arg1: i32) -> (i32, i32, i32) {
    %c0_i32 = arith.constant 0 : i32
    %c0_i32_0 = arith.constant 0 : i32
    return %arg1, %arg0, %c0_i32 : i32, i32, i32
  }
  func.func @transform_10(%arg0: i32, %arg1: i32) -> (i32, i32) {
    %c0_i32 = arith.constant 0 : i32
    %c0_i32_0 = arith.constant 0 : i32
    return %arg0, %c0_i32 : i32, i32
  }
}

</mosaic_0001>

<llo_original>
// kernel: tpu_custom_call.1
$region0: #{tpu_custom_call.1}
  #allocation0 [shape = 'u32[]', space=smem, size = 0x4, offset = 0x4, fixed_abs, tag = 'smem constant byte address 0x4 - core index']
  #allocation1 [shape = 'u32[144,128]{1,0:T(1,128)}', space=vmem, size = 0x12000, scoped, tag = 'internal scratch']
  #allocation2 [shape = 'f32[8,32]{1,0:T(8,128)}', space=vmem, size = 0x1000, scoped, tag = 'scratch operand']
  #allocation3 [shape = 'f32[8,32]{1,0:T(8,128)}', space=vmem, size = 0x1000, scoped, tag = 'scratch operand']
  %s0 = inlined_call_operand.hbm [shape: f32[8,8,16], index: 0, kind: input, shape index: {}]
  %s1 = inlined_call_operand.vmem [shape: f32[8,32], index: 1, kind: input, shape index: {}]
  %s2 = inlined_call_operand.hbm [shape: f32[8,32], index: 2, kind: input, shape index: {}]
  %s3 = inlined_call_operand.vmem [shape: f32[16,256], index: 3, kind: input, shape index: {}]
  %s4 = inlined_call_operand.hbm [shape: f32[32,256], index: 4, kind: input, shape index: {}]
  %s5 = inlined_call_operand.vmem [shape: f32[1,256], index: 5, kind: input, shape index: {}]
  %s6 = inlined_call_operand.vmem [shape: f32[32,8], index: 6, kind: input, shape index: {}]
  %s7 = inlined_call_operand.vmem [shape: f32[1,8], index: 7, kind: input, shape index: {}]
  %s8 = inlined_call_operand.hbm [shape: f32[8,8,8], index: 8, kind: output, shape index: {0}]
  %s9 = inlined_call_operand.hbm [shape: f32[8,8,32], index: 9, kind: output, shape index: {1}]
  %s10 = inlined_call_operand.hbm [shape: f32[8,32], index: 10, kind: output, shape index: {2}]
  %11 = xla_tuple %s8, %s9, %s10
  %s12 = sld [smem:[#allocation0]]
  $region101: #{tpu_custom_call.1} parent=0
    _
  %s14 = ssub.s32 1, %s12
  %s15 = scalar_select 0, %s14, %s12
  $region1: #{tpu_custom_call.1} parent=0
    #allocation4 [shape = 'u8[32768]{0}', space=vmem, size = 0x8000, scoped, tag = 'input window, operand 0']
    #allocation5 [shape = 's32[2]{0}', space=sflag, size = 0x8, scoped, tag = 'scoped memory for tpu_custom_call.1']
    #allocation6 [shape = 's32[2]{0}', space=sflag, size = 0x8, scoped, tag = 'scoped memory for tpu_custom_call.1']
    #allocation7 [shape = 'u8[4096]{0}', space=vmem, size = 0x1000, scoped, tag = 'input window, operand 2, single buffered']
    #allocation8 [shape = 's32[1]{0}', space=sflag, size = 0x4, scoped, tag = 'scoped memory for tpu_custom_call.1']
    #allocation9 [shape = 'u8[32768]{0}', space=vmem, size = 0x8000, scoped, tag = 'input window, operand 4, single buffered']
    #allocation10 [shape = 'u8[32768]{0}', space=vmem, size = 0x8000, scoped, tag = 'output window, operand 0']
    #allocation11 [shape = 'u8[32768]{0}', space=vmem, size = 0x8000, scoped, tag = 'output window, operand 1']
    #allocation12 [shape = 's32[2]{0}', space=sflag, size = 0x8, scoped, tag = 'scoped memory for tpu_custom_call.1']
    #allocation13 [shape = 'u8[4096]{0}', space=vmem, size = 0x1000, scoped, tag = 'output window, operand 2, single buffered']
    %16 = vsyncpa [#allocation5], 0
    %s17 = scalar_lea.sflag [#allocation5], 1
    %18 = vsyncpa %s17, 0
    %19 = vsyncpa [#allocation8], 0
    %20 = vsyncpa [#allocation6], 0
    %s21 = scalar_lea.sflag [#allocation6], 1
    %22 = vsyncpa %s21, 0
    %23 = vsyncpa [#allocation12], 0
    %s24 = scalar_lea.sflag [#allocation12], 1
    %25 = vsyncpa %s24, 0
    loop: start=0, step=1, limit=4
    $region2: #{tpu_custom_call.1} parent=1 // loop_pre_header
      _
    $region3: #{tpu_custom_call.1} parent=1 // loop_header
      %s27 = sphi 0, %s31
      %p28 = scmp.ge.s32.totalorder %s27, 4
      %s34 = sphi 0, %s46
      %s35 = sphi 0, %s42
      %s36 = sphi 0, %s34
      %s37 = sphi 0, %s35
      %s38 = sphi 0, %s36
      %s39 = sphi 0, %s37
      %s51 = sphi 0, %s53
      %s54 = sphi 0, %s51
      %s55 = sphi 0, %s54
      %s71 = sphi 0, %s55
      %s77 = sphi 0, %s79
      %s80 = sphi 0, %s77
      %s81 = sphi 0, %s80
      %s97 = sphi 0, %s81
      %s103 = sphi 0, %s105
      %s106 = sphi 0, %s103
      %s107 = sphi 0, %s106
      %s123 = sphi 0, %s107
      %s127 = sphi 0, %s127
      %s129 = sphi 0, %s127
      %s130 = sphi 0, %s129
      %s144 = sphi 0, %s130
      %s148 = sphi 0, %s148
      %s150 = sphi 0, %s148
      %s151 = sphi 0, %s150
      %s165 = sphi 0, %s151
      %s169 = sphi 0, %s169
      %s171 = sphi 0, %s169
      %s172 = sphi 0, %s171
      %s186 = sphi 0, %s172
      %s190 = sphi 0, %s190
      %s192 = sphi 0, %s190
      %s193 = sphi 0, %s192
      %s207 = sphi 0, %s193
      %s211 = sphi 0, %s211
      %s213 = sphi 0, %s211
      %s214 = sphi 0, %s213
      %s228 = sphi 0, %s214
      %s236 = sphi 0, %s238
      %s239 = sphi 0, %s236
      %s240 = sphi 0, %s239
      %s256 = sphi 0, %s240
      %s264 = sphi 0, %s266
      %s267 = sphi 0, %s264
      %s268 = sphi 0, %s267
      %s284 = sphi 0, %s268
      %s290 = sphi 0, %s292
      %s293 = sphi 0, %s290
      %s294 = sphi 0, %s293
      %s310 = sphi 0, %s294
    $region4: #{tpu_custom_call.1} parent=1 // loop_header_branch
      %30 = sbr.rel (%p28) target = $region8
    $region5: #{tpu_custom_call.1} parent=1 // loop_body
      %s32 = ssub.s32 %s27, 1
      %s33 = ssub.s32 %s27, 2
      %s40 = sadd.s32 1, %s35
      %p41 = scmp.ge.s32.totalorder %s40, 2
      %s42 = scalar_select %p41, 0, %s40
      %s43 = sadd.s32 1, %s34
      %s44 = scalar_select %p41, %s43, %s34
      %p45 = scmp.ge.s32.totalorder %s44, 1
      %s46 = scalar_select %p45, 0, %s44
      %s47 = ssub.s32 %s35, %s42
      %s48 = ssub.s32 %s34, %s46
      %s49 = sor.u32 %s47, %s48
      %p50 = scmp.eq.s32.totalorder %s49, 0
      %s52 = sadd.s32 %s51, 1
      %s53 = scalar_select %p50, %s51, %s52
      %p56 = pneg %p50
      %p57 = scmp.eq.s32.totalorder %s27, 1
      %p58 = por %p56, %p57
      %p59 = scmp.ne.s32.totalorder %s51, %s54
      %p60 = scmp.eq.s32.totalorder %s27, 0
      %p61 = por %p59, %p60
      %p62 = scmp.ne.s32.totalorder %s51, %s54
      %p63 = scmp.eq.s32.totalorder %s32, 1
      %p64 = por %p62, %p63
      %p65 = scmp.ne.s32.totalorder %s54, %s55
      %p66 = scmp.eq.s32.totalorder %s32, 0
      %p67 = por %p65, %p66
      %p68 = scmp.ne.s32.totalorder %s54, %s55
      %p69 = scmp.eq.s32.totalorder %s33, 1
      %p70 = por %p68, %p69
      %p72 = scmp.ne.s32.totalorder %s55, %s71
      %p73 = scmp.eq.s32.totalorder %s33, 0
      %p74 = por %p72, %p73
      %s75 = ssub.s32 %s34, %s46
      %p76 = scmp.eq.s32.totalorder %s75, 0
      %s78 = sadd.s32 %s77, 1
      %s79 = scalar_select %p76, %s77, %s78
      %p82 = pneg %p76
      %p83 = scmp.eq.s32.totalorder %s27, 1
      %p84 = por %p82, %p83
      %p85 = scmp.ne.s32.totalorder %s77, %s80
      %p86 = scmp.eq.s32.totalorder %s27, 0
      %p87 = por %p85, %p86
      %p88 = scmp.ne.s32.totalorder %s77, %s80
      %p89 = scmp.eq.s32.totalorder %s32, 1
      %p90 = por %p88, %p89
      %p91 = scmp.ne.s32.totalorder %s80, %s81
      %p92 = scmp.eq.s32.totalorder %s32, 0
      %p93 = por %p91, %p92
      %p94 = scmp.ne.s32.totalorder %s80, %s81
      %p95 = scmp.eq.s32.totalorder %s33, 1
      %p96 = por %p94, %p95
      %p98 = scmp.ne.s32.totalorder %s81, %s97
      %p99 = scmp.eq.s32.totalorder %s33, 0
      %p100 = por %p98, %p99
      %s101 = ssub.s32 %s34, %s46
      %p102 = scmp.eq.s32.totalorder %s101, 0
      %s104 = sadd.s32 %s103, 1
      %s105 = scalar_select %p102, %s103, %s104
      %p108 = pneg %p102
      %p109 = scmp.eq.s32.totalorder %s27, 1
      %p110 = por %p108, %p109
      %p111 = scmp.ne.s32.totalorder %s103, %s106
      %p112 = scmp.eq.s32.totalorder %s27, 0
      %p113 = por %p111, %p112
      %p114 = scmp.ne.s32.totalorder %s103, %s106
      %p115 = scmp.eq.s32.totalorder %s32, 1
      %p116 = por %p114, %p115
      %p117 = scmp.ne.s32.totalorder %s106, %s107
      %p118 = scmp.eq.s32.totalorder %s32, 0
      %p119 = por %p117, %p118
      %p120 = scmp.ne.s32.totalorder %s106, %s107
      %p121 = scmp.eq.s32.totalorder %s33, 1
      %p122 = por %p120, %p121
      %p124 = scmp.ne.s32.totalorder %s107, %s123
      %p125 = scmp.eq.s32.totalorder %s33, 0
      %p126 = por %p124, %p125
      %s128 = sadd.s32 %s127, 1
      %p131 = scmp.eq.s32.totalorder %s27, 1
      %p132 = scmp.ne.s32.totalorder %s127, %s129
      %p133 = scmp.eq.s32.totalorder %s27, 0
      %p134 = por %p132, %p133
      %p135 = scmp.ne.s32.totalorder %s127, %s129
      %p136 = scmp.eq.s32.totalorder %s32, 1
      %p137 = por %p135, %p136
      %p138 = scmp.ne.s32.totalorder %s129, %s130
      %p139 = scmp.eq.s32.totalorder %s32, 0
      %p140 = por %p138, %p139
      %p141 = scmp.ne.s32.totalorder %s129, %s130
      %p142 = scmp.eq.s32.totalorder %s33, 1
      %p143 = por %p141, %p142
      %p145 = scmp.ne.s32.totalorder %s130, %s144
      %p146 = scmp.eq.s32.totalorder %s33, 0
      %p147 = por %p145, %p146
      %s149 = sadd.s32 %s148, 1
      %p152 = scmp.eq.s32.totalorder %s27, 1
      %p153 = scmp.ne.s32.totalorder %s148, %s150
      %p154 = scmp.eq.s32.totalorder %s27, 0
      %p155 = por %p153, %p154
      %p156 = scmp.ne.s32.totalorder %s148, %s150
      %p157 = scmp.eq.s32.totalorder %s32, 1
      %p158 = por %p156, %p157
      %p159 = scmp.ne.s32.totalorder %s150, %s151
      %p160 = scmp.eq.s32.totalorder %s32, 0
      %p161 = por %p159, %p160
      %p162 = scmp.ne.s32.totalorder %s150, %s151
      %p163 = scmp.eq.s32.totalorder %s33, 1
      %p164 = por %p162, %p163
      %p166 = scmp.ne.s32.totalorder %s151, %s165
      %p167 = scmp.eq.s32.totalorder %s33, 0
      %p168 = por %p166, %p167
      %s170 = sadd.s32 %s169, 1
      %p173 = scmp.eq.s32.totalorder %s27, 1
      %p174 = scmp.ne.s32.totalorder %s169, %s171
      %p175 = scmp.eq.s32.totalorder %s27, 0
      %p176 = por %p174, %p175
      %p177 = scmp.ne.s32.totalorder %s169, %s171
      %p178 = scmp.eq.s32.totalorder %s32, 1
      %p179 = por %p177, %p178
      %p180 = scmp.ne.s32.totalorder %s171, %s172
      %p181 = scmp.eq.s32.totalorder %s32, 0
      %p182 = por %p180, %p181
      %p183 = scmp.ne.s32.totalorder %s171, %s172
      %p184 = scmp.eq.s32.totalorder %s33, 1
      %p185 = por %p183, %p184
      %p187 = scmp.ne.s32.totalorder %s172, %s186
      %p188 = scmp.eq.s32.totalorder %s33, 0
      %p189 = por %p187, %p188
      %s191 = sadd.s32 %s190, 1
      %p194 = scmp.eq.s32.totalorder %s27, 1
      %p195 = scmp.ne.s32.totalorder %s190, %s192
      %p196 = scmp.eq.s32.totalorder %s27, 0
      %p197 = por %p195, %p196
      %p198 = scmp.ne.s32.totalorder %s190, %s192
      %p199 = scmp.eq.s32.totalorder %s32, 1
      %p200 = por %p198, %p199
      %p201 = scmp.ne.s32.totalorder %s192, %s193
      %p202 = scmp.eq.s32.totalorder %s32, 0
      %p203 = por %p201, %p202
      %p204 = scmp.ne.s32.totalorder %s192, %s193
      %p205 = scmp.eq.s32.totalorder %s33, 1
      %p206 = por %p204, %p205
      %p208 = scmp.ne.s32.totalorder %s193, %s207
      %p209 = scmp.eq.s32.totalorder %s33, 0
      %p210 = por %p208, %p209
      %s212 = sadd.s32 %s211, 1
      %p215 = scmp.eq.s32.totalorder %s27, 1
      %p216 = scmp.ne.s32.totalorder %s211, %s213
      %p217 = scmp.eq.s32.totalorder %s27, 0
      %p218 = por %p216, %p217
      %p219 = scmp.ne.s32.totalorder %s211, %s213
      %p220 = scmp.eq.s32.totalorder %s32, 1
      %p221 = por %p219, %p220
      %p222 = scmp.ne.s32.totalorder %s213, %s214
      %p223 = scmp.eq.s32.totalorder %s32, 0
      %p224 = por %p222, %p223
      %p225 = scmp.ne.s32.totalorder %s213, %s214
      %p226 = scmp.eq.s32.totalorder %s33, 1
      %p227 = por %p225, %p226
      %p229 = scmp.ne.s32.totalorder %s214, %s228
      %p230 = scmp.eq.s32.totalorder %s33, 0
      %p231 = por %p229, %p230
      %s232 = ssub.s32 %s35, %s42
      %s233 = ssub.s32 %s34, %s46
      %s234 = sor.u32 %s232, %s233
      %p235 = scmp.eq.s32.totalorder %s234, 0
      %s237 = sadd.s32 %s236, 1
      %s238 = scalar_select %p235, %s236, %s237
      %p241 = pneg %p235
      %p242 = scmp.eq.s32.totalorder %s27, 1
      %p243 = por %p241, %p242
      %p244 = scmp.ne.s32.totalorder %s236, %s239
      %p245 = scmp.eq.s32.totalorder %s27, 0
      %p246 = por %p244, %p245
      %p247 = scmp.ne.s32.totalorder %s236, %s239
      %p248 = scmp.eq.s32.totalorder %s32, 1
      %p249 = por %p247, %p248
      %p250 = scmp.ne.s32.totalorder %s239, %s240
      %p251 = scmp.eq.s32.totalorder %s32, 0
      %p252 = por %p250, %p251
      %p253 = scmp.ne.s32.totalorder %s239, %s240
      %p254 = scmp.eq.s32.totalorder %s33, 1
      %p255 = por %p253, %p254
      %p257 = scmp.ne.s32.totalorder %s240, %s256
      %p258 = scmp.eq.s32.totalorder %s33, 0
      %p259 = por %p257, %p258
      %s260 = ssub.s32 %s35, %s42
      %s261 = ssub.s32 %s34, %s46
      %s262 = sor.u32 %s260, %s261
      %p263 = scmp.eq.s32.totalorder %s262, 0
      %s265 = sadd.s32 %s264, 1
      %s266 = scalar_select %p263, %s264, %s265
      %p269 = pneg %p263
      %p270 = scmp.eq.s32.totalorder %s27, 1
      %p271 = por %p269, %p270
      %p272 = scmp.ne.s32.totalorder %s264, %s267
      %p273 = scmp.eq.s32.totalorder %s27, 0
      %p274 = por %p272, %p273
      %p275 = scmp.ne.s32.totalorder %s264, %s267
      %p276 = scmp.eq.s32.totalorder %s32, 1
      %p277 = por %p275, %p276
      %p278 = scmp.ne.s32.totalorder %s267, %s268
      %p279 = scmp.eq.s32.totalorder %s32, 0
      %p280 = por %p278, %p279
      %p281 = scmp.ne.s32.totalorder %s267, %s268
      %p282 = scmp.eq.s32.totalorder %s33, 1
      %p283 = por %p281, %p282
      %p285 = scmp.ne.s32.totalorder %s268, %s284
      %p286 = scmp.eq.s32.totalorder %s33, 0
      %p287 = por %p285, %p286
      %s288 = ssub.s32 %s34, %s46
      %p289 = scmp.eq.s32.totalorder %s288, 0
      %s291 = sadd.s32 %s290, 1
      %s292 = scalar_select %p289, %s290, %s291
      %p295 = pneg %p289
      %p296 = scmp.eq.s32.totalorder %s27, 1
      %p297 = por %p295, %p296
      %p298 = scmp.ne.s32.totalorder %s290, %s293
      %p299 = scmp.eq.s32.totalorder %s27, 0
      %p300 = por %p298, %p299
      %p301 = scmp.ne.s32.totalorder %s290, %s293
      %p302 = scmp.eq.s32.totalorder %s32, 1
      %p303 = por %p301, %p302
      %p304 = scmp.ne.s32.totalorder %s293, %s294
      %p305 = scmp.eq.s32.totalorder %s32, 0
      %p306 = por %p304, %p305
      %p307 = scmp.ne.s32.totalorder %s293, %s294
      %p308 = scmp.eq.s32.totalorder %s33, 1
      %p309 = por %p307, %p308
      %p311 = scmp.ne.s32.totalorder %s294, %s310
      %p312 = scmp.eq.s32.totalorder %s33, 0
      %p313 = por %p311, %p312
      %p314 = scmp.le.s32.totalorder 1, %s27
      %p315 = scmp.lt.s32.totalorder %s27, 3
      %p316 = pnand %p314, %p315
      %p317 = pneg %p316
      // Predicated region
      $region9: #{tpu_custom_call.1} parent=5 // pred_check
        _
      $region10: #{tpu_custom_call.1} parent=5 // pred_check_branch
        %319 = sbr.rel (%p316) target = $region12
      $region11: #{tpu_custom_call.1} parent=5 // pred_region
        %s320 = ssub.s32 %s27, 1
        // Predicated region
        $region13: #{tpu_custom_call.1} parent=11 // pred_check
          %p321 = pneg %p93
        $region14: #{tpu_custom_call.1} parent=11 // pred_check_branch
          %323 = sbr.rel (%p321) target = $region16
        $region15: #{tpu_custom_call.1} parent=11 // pred_region
          %p324 = scmp.lt.s32.totalorder %s36, 0
          %s325 = scalar_select %p324, %s36, 0
          %s326 = smul.addr %s325, 8
          %s327 = scalar_lea.vmem %s1, %s326
        $region16: #{tpu_custom_call.1} parent=11 // pred_fallthru
          _
        // Predicated region
        $region17: #{tpu_custom_call.1} parent=11 // pred_check
          %p328 = pneg %p119
        $region18: #{tpu_custom_call.1} parent=11 // pred_check_branch
          %330 = sbr.rel (%p328) target = $region20
        $region19: #{tpu_custom_call.1} parent=11 // pred_region
          %s332 = ssub.s32 128, 128
          %333 = vsyncadd [#allocation8], %s332
          %s334 = smul.addr %s36, 128
          %s335 = scalar_lea.hbm %s2, %s334
          %s337 = sshll.u32 [#allocation7], 4
          %s338 = int_to_ptr.vmem [resolvable:$true] %s337
          %340 = dma.hbm_to_vmem [thread:$0]  %s335, 128, %s338, [#allocation8]
        $region20: #{tpu_custom_call.1} parent=11 // pred_fallthru
          _
        // Predicated region
        $region21: #{tpu_custom_call.1} parent=11 // pred_check
          %p341 = pneg %p140
        $region22: #{tpu_custom_call.1} parent=11 // pred_check_branch
          %343 = sbr.rel (%p341) target = $region24
        $region23: #{tpu_custom_call.1} parent=11 // pred_region
          _
        $region24: #{tpu_custom_call.1} parent=11 // pred_fallthru
          _
        // Predicated region
        $region25: #{tpu_custom_call.1} parent=11 // pred_check
          %p344 = pneg %p161
        $region26: #{tpu_custom_call.1} parent=11 // pred_check_branch
          %346 = sbr.rel (%p344) target = $region28
        $region27: #{tpu_custom_call.1} parent=11 // pred_region
          %s348 = ssub.s32 1024, 1024
          %349 = vsyncadd [#allocation8], %s348
          %s350 = sshll.u32 [#allocation9], 4
          %s351 = int_to_ptr.vmem [resolvable:$true] %s350
          %356 = dma.hbm_to_vmem [thread:$0]  %s4, 1024, %s351, [#allocation8], 256, 256, 16
        $region28: #{tpu_custom_call.1} parent=11 // pred_fallthru
          _
        // Predicated region
        $region29: #{tpu_custom_call.1} parent=11 // pred_check
          %p357 = pneg %p182
        $region30: #{tpu_custom_call.1} parent=11 // pred_check_branch
          %359 = sbr.rel (%p357) target = $region32
        $region31: #{tpu_custom_call.1} parent=11 // pred_region
          _
        $region32: #{tpu_custom_call.1} parent=11 // pred_fallthru
          _
        // Predicated region
        $region33: #{tpu_custom_call.1} parent=11 // pred_check
          %p360 = pneg %p203
        $region34: #{tpu_custom_call.1} parent=11 // pred_check_branch
          %362 = sbr.rel (%p360) target = $region36
        $region35: #{tpu_custom_call.1} parent=11 // pred_region
          _
        $region36: #{tpu_custom_call.1} parent=11 // pred_fallthru
          _
        // Predicated region
        $region37: #{tpu_custom_call.1} parent=11 // pred_check
          %p363 = pneg %p224
        $region38: #{tpu_custom_call.1} parent=11 // pred_check_branch
          %365 = sbr.rel (%p363) target = $region40
        $region39: #{tpu_custom_call.1} parent=11 // pred_region
          _
        $region40: #{tpu_custom_call.1} parent=11 // pred_fallthru
          _
      $region12: #{tpu_custom_call.1} parent=5 // pred_fallthru
        _
      %p366 = scmp.lt.s32.totalorder %s27, 2
      // Predicated region
      $region41: #{tpu_custom_call.1} parent=5 // pred_check
        %p367 = pneg %p366
      $region42: #{tpu_custom_call.1} parent=5 // pred_check_branch
        %369 = sbr.rel (%p367) target = $region44
      $region43: #{tpu_custom_call.1} parent=5 // pred_region
        // Predicated region
        $region45: #{tpu_custom_call.1} parent=43 // pred_check
          %p370 = pneg %p61
        $region46: #{tpu_custom_call.1} parent=43 // pred_check_branch
          %372 = sbr.rel (%p370) target = $region48
        $region47: #{tpu_custom_call.1} parent=43 // pred_region
          %s373 = sand.u32 %s51, 1
          %s374 = scalar_lea.sflag [#allocation5], %s373
          %s375 = sand.u32 %s51, 1
          %s376 = smul.addr %s375, 32
          %s377 = scalar_lea.vmem [#allocation4], %s376
          %s378 = smul.u32 4, %s35
          %s380 = ssub.s32 512, 512
          %381 = vsyncadd %s374, %s380
          %s382 = sadd.s32 %s34, %s378
          %s383 = smul.addr %s382, 128
          %s384 = scalar_lea.hbm %s0, %s383
          %s385 = sshll.u32 %s377, 4
          %s386 = int_to_ptr.vmem [resolvable:$true] %s385
          %391 = dma.hbm_to_vmem [thread:$0]  %s384, 512, %s386, %s374, 128, 128, 8
        $region48: #{tpu_custom_call.1} parent=43 // pred_fallthru
          _
      $region44: #{tpu_custom_call.1} parent=5 // pred_fallthru
        _
      %p392 = scmp.le.s32.totalorder 1, %s27
      %p393 = scmp.lt.s32.totalorder %s27, 3
      %p394 = pnand %p392, %p393
      %p395 = pneg %p394
      // Predicated region
      $region49: #{tpu_custom_call.1} parent=5 // pred_check
        _
      $region50: #{tpu_custom_call.1} parent=5 // pred_check_branch
        %397 = sbr.rel (%p394) target = $region52
      $region51: #{tpu_custom_call.1} parent=5 // pred_region
        %s398 = ssub.s32 %s27, 1
        %s399 = sand.u32 %s54, 1
        %s400 = scalar_lea.sflag [#allocation5], %s399
        %s401 = sand.u32 %s54, 1
        %s402 = smul.addr %s401, 32
        %s403 = scalar_lea.vmem [#allocation4], %s402
        // Predicated region
        $region53: #{tpu_custom_call.1} parent=51 // pred_check
          %p404 = pneg %p67
        $region54: #{tpu_custom_call.1} parent=51 // pred_check_branch
          %406 = sbr.rel (%p404) target = $region56
        $region55: #{tpu_custom_call.1} parent=51 // pred_region
          %407 = dma.done %s400, 512
        $region56: #{tpu_custom_call.1} parent=51 // pred_fallthru
          _
        // Predicated region
        $region57: #{tpu_custom_call.1} parent=51 // pred_check
          %p408 = pneg %p119
        $region58: #{tpu_custom_call.1} parent=51 // pred_check_branch
          %410 = sbr.rel (%p408) target = $region60
        $region59: #{tpu_custom_call.1} parent=51 // pred_region
          %411 = dma.done [#allocation8], 128
        $region60: #{tpu_custom_call.1} parent=51 // pred_fallthru
          _
        // Predicated region
        $region61: #{tpu_custom_call.1} parent=51 // pred_check
          %p412 = pneg %p161
        $region62: #{tpu_custom_call.1} parent=51 // pred_check_branch
          %414 = sbr.rel (%p412) target = $region64
        $region63: #{tpu_custom_call.1} parent=51 // pred_region
          %415 = dma.done [#allocation8], 1024
        $region64: #{tpu_custom_call.1} parent=51 // pred_fallthru
          _
        %s416 = sand.u32 %s54, 1
        %s417 = scalar_lea.sflag [#allocation5], %s416
        %s418 = sand.u32 %s54, 1
        %s419 = smul.addr %s418, 32
        %s420 = scalar_lea.vmem [#allocation4], %s419
        %p421 = pneg %p67
        %p422 = pneg %p64
        %p423 = scmp.lt.s32.totalorder %s36, 0
        %s424 = scalar_select %p423, %s36, 0
        %s425 = smul.addr %s424, 8
        %s426 = scalar_lea.vmem %s1, %s425
        %p427 = pneg %p93
        %p428 = pneg %p90
        %p429 = pneg %p119
        %p430 = pneg %p116
        %p431 = pneg %p140
        %p432 = pneg %p137
        %p433 = pneg %p161
        %p434 = pneg %p158
        %p435 = pneg %p182
        %p436 = pneg %p179
        %p437 = pneg %p203
        %p438 = pneg %p200
        %p439 = pneg %p224
        %p440 = pneg %p221
        %p441 = pneg %p252
        %p442 = pneg %p249
        %s443 = sand.u32 %s239, 1
        %s444 = scalar_lea.sflag [#allocation6], %s443
        %s445 = sand.u32 %s239, 1
        %s446 = smul.addr %s445, 32
        %s447 = scalar_lea.vmem [#allocation10], %s446
        %p448 = pneg %p280
        %p449 = pneg %p277
        %s450 = sand.u32 %s32, 1
        %s451 = scalar_lea.sflag [#allocation12], %s450
        %s452 = sand.u32 %s267, 1
        %s453 = smul.addr %s452, 32
        %s454 = scalar_lea.vmem [#allocation11], %s453
        %p455 = pneg %p306
        %p456 = pneg %p303
        %s457 = smul.u32 4, %s37
        %p458 = scmp.lt.s32.totalorder %s36, 0
        %s459 = scalar_select %p458, %s36, 0
        %s460 = smul.addr %s459, 8
        %s461 = scalar_lea.vmem %s1, %s460
        %s462 = smul.u32 4, %s37
        %s463 = smul.u32 4, %s37
        %p464 = scmp.eq.s32.totalorder %s37, 0
        // Predicated region
        $region65: #{tpu_custom_call.1} parent=51 // pred_check
          %p465 = pneg %p464
        $region66: #{tpu_custom_call.1} parent=51 // pred_check_branch
          %467 = sbr.rel (%p465) target = $region68
        $region67: #{tpu_custom_call.1} parent=51 // pred_region
          %v468 = vld [vmem:[%s461] sm:$0xff]
          %vm469 = vcmask 261120
          %470 = vst.msk [vmem:[#allocation2] sm:$0xff] %vm469, %v468
          %v471 = vld [vmem:[#allocation7] sm:$0xff]
          %472 = vst.msk [vmem:[#allocation3] sm:$0xff] %vm469, %v471
        $region68: #{tpu_custom_call.1} parent=51 // pred_fallthru
          _
        %v473 = vld [vmem:[%s5] sm:$0x3]
        %v475 = vlaneseq
        %v476 = vshrl.u32 %v475, 7
        %v477 = vsub.s32 0, %v476
        %v478 = vrot.slane %v473, %v477
        %v479 = vlaneseq
        %v480 = vshrl.u32 %v479, 7
        %v481 = vsub.s32 1, %v480
        %v482 = vrot.slane %v473, %v481
        %v485 = vld [vmem:[%s7] sm:$0x1]
        %v487 = vlaneseq
        %v488 = vshrl.u32 %v487, 7
        %v489 = vsub.s32 0, %v488
        %v490 = vrot.slane %v485, %v489
        %v492 = vld [vmem:[#allocation2] sm:$0xff]
        %v493 = vld [vmem:[#allocation3] sm:$0xff]
        %v494 = vld [vmem:[%s403] sm:$0xff]
        %v495 = vld [vmem:[%s3] sm:$0xff]
        %v496 = vld [vmem:[%s3 + $0x8] sm:$0xff]
        %v497 = vld [vmem:[%s3 + $0x10] sm:$0xff]
        %v498 = vld [vmem:[%s3 + $0x18] sm:$0xff]
        %v499 = vld [vmem:[#allocation9] sm:$0xff]
        %v500 = vld [vmem:[#allocation9 + $0x8] sm:$0xff]
        %v501 = vld [vmem:[#allocation9 + $0x10] sm:$0xff]
        %v502 = vld [vmem:[#allocation9 + $0x18] sm:$0xff]
        %v503 = vld [vmem:[#allocation9 + $0x20] sm:$0xff]
        %v504 = vld [vmem:[#allocation9 + $0x28] sm:$0xff]
        %v505 = vld [vmem:[#allocation9 + $0x30] sm:$0xff]
        %v506 = vld [vmem:[#allocation9 + $0x38] sm:$0xff]
        %vm507 = vcmask 261120
        %v509 = vsel %vm507, %v492, 0
        %511 = vmatprep.subr.mxu0 %v500
        %512 = vmatpush1.msra.mxu0 %v499
        %513 = vmatprep.subr.mxu0 %v502
        %514 = vmatpush1.msra.mxu0 %v501
        %515 = vmatprep.subr.mxu0 %v504
        %516 = vmatpush1.msra.mxu0 %v503
        %517 = vmatprep.subr.mxu0 %v506
        %518 = vmatpush1.msra.mxu0 %v505
        %519 = vmatprep.subr.mxu0 0.0
        %520 = vmatpush1.msra.mxu0 0.0
        %521 = vmatprep.subr.mxu0 0.0
        %522 = vmatpush1.msra.mxu0 0.0
        %523 = vmatprep.subr.mxu0 0.0
        %524 = vmatpush1.msra.mxu0 0.0
        %525 = vmatprep.subr.mxu0 0.0
        %526 = vmatpush1.msra.mxu0 0.0
        %527 = vmatprep.subr.mxu0 0.0
        %528 = vmatpush1.msra.mxu0 0.0
        %529 = vmatprep.subr.mxu0 0.0
        %530 = vmatpush1.msra.mxu0 0.0
        %531 = vmatprep.subr.mxu0 0.0
        %532 = vmatpush1.msra.mxu0 0.0
        %533 = vmatprep.subr.mxu0 0.0
        %534 = vmatpush1.msra.mxu0 0.0
        %535 = vmatprep.subr.mxu0 0.0
        %536 = vmatpush1.msra.mxu0 0.0
        %537 = vmatprep.subr.mxu0 0.0
        %538 = vmatpush1.msra.mxu0 0.0
        %539 = vmatprep.subr.mxu0 0.0
        %540 = vmatpush1.msra.mxu0 0.0
        %541 = vmatprep.subr.mxu0 0.0
        %542 = vmatpush1.msra.mxu0 0.0
        %543 = vmatprep.subr.mxu0 0.0
        %544 = vmatpush1.msra.mxu0 0.0
        %545 = vmatprep.subr.mxu0 0.0
        %546 = vmatpush1.msra.mxu0 0.0
        %547 = vmatprep.subr.mxu0 0.0
        %548 = vmatpush1.msra.mxu0 0.0
        %549 = vmatprep.subr.mxu0 0.0
        %550 = vmatpush1.msra.mxu0 0.0
        %551 = vmatprep.subr.mxu0 0.0
        %552 = vmatpush1.msra.mxu0 0.0
        %553 = vmatprep.subr.mxu0 0.0
        %554 = vmatpush1.msra.mxu0 0.0
        %555 = vmatprep.subr.mxu0 0.0
        %556 = vmatpush1.msra.mxu0 0.0
        %557 = vmatprep.subr.mxu0 0.0
        %558 = vmatpush1.msra.mxu0 0.0
        %559 = vmatprep.subr.mxu0 0.0
        %560 = vmatpush1.msra.mxu0 0.0
        %561 = vmatprep.subr.mxu0 0.0
        %562 = vmatpush1.msra.mxu0 0.0
        %563 = vmatprep.subr.mxu0 0.0
        %564 = vmatpush1.msra.mxu0 0.0
        %565 = vmatprep.subr.mxu0 0.0
        %566 = vmatpush1.msra.mxu0 0.0
        %567 = vmatprep.subr.mxu0 0.0
        %568 = vmatpush1.msra.mxu0 0.0
        %569 = vmatprep.subr.mxu0 0.0
        %570 = vmatpush1.msra.mxu0 0.0
        %571 = vmatprep.subr.mxu0 0.0
        %572 = vmatpush1.msra.mxu0 0.0
        %573 = vmatprep.subr.mxu0 0.0
        %574 = vmatpush1.msra.mxu0 0.0
        %575 = vmatprep.mubr.f32.mxu0 0.0
        %576 = vmatmul.mubr.f32.gmra.mrb[0].mxu0 %v509
        %v577 = vpop.f32.mrb[0].mxu0
        %v578 = vadd.f32 0.0, %v577
        %v579 = vpop.f32.mrb[0].mxu0
        %v580 = vadd.f32 0.0, %v579
        %581 = vdwg.mxu0
        %vm582 = vcmask 130048
        %v584 = vsel %vm582, %v494, 0
        %586 = vmatprep.subr.mxu0 %v496
        %587 = vmatpush1.msra.mxu0 %v495
        %588 = vmatprep.subr.mxu0 %v498
        %589 = vmatpush1.msra.mxu0 %v497
        %590 = vmatprep.subr.mxu0 0.0
        %591 = vmatpush1.msra.mxu0 0.0
        %592 = vmatprep.subr.mxu0 0.0
        %593 = vmatpush1.msra.mxu0 0.0
        %594 = vmatprep.subr.mxu0 0.0
        %595 = vmatpush1.msra.mxu0 0.0
        %596 = vmatprep.subr.mxu0 0.0
        %597 = vmatpush1.msra.mxu0 0.0
        %598 = vmatprep.subr.mxu0 0.0
        %599 = vmatpush1.msra.mxu0 0.0
        %600 = vmatprep.subr.mxu0 0.0
        %601 = vmatpush1.msra.mxu0 0.0
        %602 = vmatprep.subr.mxu0 0.0
        %603 = vmatpush1.msra.mxu0 0.0
        %604 = vmatprep.subr.mxu0 0.0
        %605 = vmatpush1.msra.mxu0 0.0
        %606 = vmatprep.subr.mxu0 0.0
        %607 = vmatpush1.msra.mxu0 0.0
        %608 = vmatprep.subr.mxu0 0.0
        %609 = vmatpush1.msra.mxu0 0.0
        %610 = vmatprep.subr.mxu0 0.0
        %611 = vmatpush1.msra.mxu0 0.0
        %612 = vmatprep.subr.mxu0 0.0
        %613 = vmatpush1.msra.mxu0 0.0
        %614 = vmatprep.subr.mxu0 0.0
        %615 = vmatpush1.msra.mxu0 0.0
        %616 = vmatprep.subr.mxu0 0.0
        %617 = vmatpush1.msra.mxu0 0.0
        %618 = vmatprep.subr.mxu0 0.0
        %619 = vmatpush1.msra.mxu0 0.0
        %620 = vmatprep.subr.mxu0 0.0
        %621 = vmatpush1.msra.mxu0 0.0
        %622 = vmatprep.subr.mxu0 0.0
        %623 = vmatpush1.msra.mxu0 0.0
        %624 = vmatprep.subr.mxu0 0.0
        %625 = vmatpush1.msra.mxu0 0.0
        %626 = vmatprep.subr.mxu0 0.0
        %627 = vmatpush1.msra.mxu0 0.0
        %628 = vmatprep.subr.mxu0 0.0
        %629 = vmatpush1.msra.mxu0 0.0
        %630 = vmatprep.subr.mxu0 0.0
        %631 = vmatpush1.msra.mxu0 0.0
        %632 = vmatprep.subr.mxu0 0.0
        %633 = vmatpush1.msra.mxu0 0.0
        %634 = vmatprep.subr.mxu0 0.0
        %635 = vmatpush1.msra.mxu0 0.0
        %636 = vmatprep.subr.mxu0 0.0
        %637 = vmatpush1.msra.mxu0 0.0
        %638 = vmatprep.subr.mxu0 0.0
        %639 = vmatpush1.msra.mxu0 0.0
        %640 = vmatprep.subr.mxu0 0.0
        %641 = vmatpush1.msra.mxu0 0.0
        %642 = vmatprep.subr.mxu0 0.0
        %643 = vmatpush1.msra.mxu0 0.0
        %644 = vmatprep.subr.mxu0 0.0
        %645 = vmatpush1.msra.mxu0 0.0
        %646 = vmatprep.subr.mxu0 0.0
        %647 = vmatpush1.msra.mxu0 0.0
        %648 = vmatprep.subr.mxu0 0.0
        %649 = vmatpush1.msra.mxu0 0.0
        %650 = vmatprep.mubr.f32.mxu0 0.0
        %651 = vmatmul.mubr.f32.gmra.mrb[0].mxu0 %v584
        %v652 = vpop.f32.mrb[0].mxu0
        %v653 = vadd.f32 %v578, %v652
        %v654 = vpop.f32.mrb[0].mxu0
        %v655 = vadd.f32 %v580, %v654
        %656 = vdwg.mxu0
        %v657 = vadd.f32 %v653, %v478
        %v658 = vadd.f32 %v655, %v482
        %v659 = vxor.u32 %v657, 2147483648
        %v660 = vmul.f32 %v659, 1.442695
        %v661 = vpow.pop %v660
        %v662 = vadd.f32 %v661, 1.0
        %v663 = vrcp.pop %v662
        %v664 = vmul.f32 1.0, %v663
        %v665 = vtanh.pop %v658
        %667 = vrot.lane.b32.xlu0 %v493, 32
        %v668 = vpop.permute.xlu0 %667
        %v670 = vmul.f32 %v664, %v668
        %v671 = vmul.f32 %v664, %v665
        %673 = vrot.lane.b32.xlu0 %v671, 32
        %v674 = vpop.permute.xlu0 %673
        %v676 = vadd.f32 %v670, %v674
        %v677 = vtanh.pop %v676
        %679 = vrot.lane.b32.xlu0 %v677, 32
        %v680 = vpop.permute.xlu0 %679
        %v682 = vmul.f32 %v664, %v680
        %v683 = vld [vmem:[%s6] sm:$0xff]
        %v684 = vld [vmem:[%s6 + $0x8] sm:$0xff]
        %v685 = vld [vmem:[%s6 + $0x10] sm:$0xff]
        %v686 = vld [vmem:[%s6 + $0x18] sm:$0xff]
        %688 = vrot.lane.b32.xlu0 %v682, 64
        %v689 = vpop.permute.xlu0 %688
        %v690 = vsel %vm507, %v689, 0
        %692 = vmatprep.subr.mxu0 0.0
        %693 = vmatpush1.msra.mxu0 %v683
        %694 = vmatprep.subr.mxu0 0.0
        %695 = vmatpush1.msra.mxu0 %v684
        %696 = vmatprep.subr.mxu0 0.0
        %697 = vmatpush1.msra.mxu0 %v685
        %698 = vmatprep.subr.mxu0 0.0
        %699 = vmatpush1.msra.mxu0 %v686
        %700 = vmatprep.subr.mxu0 0.0
        %701 = vmatpush1.msra.mxu0 0.0
        %702 = vmatprep.subr.mxu0 0.0
        %703 = vmatpush1.msra.mxu0 0.0
        %704 = vmatprep.subr.mxu0 0.0
        %705 = vmatpush1.msra.mxu0 0.0
        %706 = vmatprep.subr.mxu0 0.0
        %707 = vmatpush1.msra.mxu0 0.0
        %708 = vmatprep.subr.mxu0 0.0
        %709 = vmatpush1.msra.mxu0 0.0
        %710 = vmatprep.subr.mxu0 0.0
        %711 = vmatpush1.msra.mxu0 0.0
        %712 = vmatprep.subr.mxu0 0.0
        %713 = vmatpush1.msra.mxu0 0.0
        %714 = vmatprep.subr.mxu0 0.0
        %715 = vmatpush1.msra.mxu0 0.0
        %716 = vmatprep.subr.mxu0 0.0
        %717 = vmatpush1.msra.mxu0 0.0
        %718 = vmatprep.subr.mxu0 0.0
        %719 = vmatpush1.msra.mxu0 0.0
        %720 = vmatprep.subr.mxu0 0.0
        %721 = vmatpush1.msra.mxu0 0.0
        %722 = vmatprep.subr.mxu0 0.0
        %723 = vmatpush1.msra.mxu0 0.0
        %724 = vmatprep.subr.mxu0 0.0
        %725 = vmatpush1.msra.mxu0 0.0
        %726 = vmatprep.subr.mxu0 0.0
        %727 = vmatpush1.msra.mxu0 0.0
        %728 = vmatprep.subr.mxu0 0.0
        %729 = vmatpush1.msra.mxu0 0.0
        %730 = vmatprep.subr.mxu0 0.0
        %731 = vmatpush1.msra.mxu0 0.0
        %732 = vmatprep.subr.mxu0 0.0
        %733 = vmatpush1.msra.mxu0 0.0
        %734 = vmatprep.subr.mxu0 0.0
        %735 = vmatpush1.msra.mxu0 0.0
        %736 = vmatprep.subr.mxu0 0.0
        %737 = vmatpush1.msra.mxu0 0.0
        %738 = vmatprep.subr.mxu0 0.0
        %739 = vmatpush1.msra.mxu0 0.0
        %740 = vmatprep.subr.mxu0 0.0
        %741 = vmatpush1.msra.mxu0 0.0
        %742 = vmatprep.subr.mxu0 0.0
        %743 = vmatpush1.msra.mxu0 0.0
        %744 = vmatprep.subr.mxu0 0.0
        %745 = vmatpush1.msra.mxu0 0.0
        %746 = vmatprep.subr.mxu0 0.0
        %747 = vmatpush1.msra.mxu0 0.0
        %748 = vmatprep.subr.mxu0 0.0
        %749 = vmatpush1.msra.mxu0 0.0
        %750 = vmatprep.subr.mxu0 0.0
        %751 = vmatpush1.msra.mxu0 0.0
        %752 = vmatprep.subr.mxu0 0.0
        %753 = vmatpush1.msra.mxu0 0.0
        %754 = vmatprep.subr.mxu0 0.0
        %755 = vmatpush1.msra.mxu0 0.0
        %756 = vmatprep.mubr.f32.mxu0 0.0
        %757 = vmatmul.mubr.f32.gmra.mrb[0].mxu0 %v690
        %v758 = vpop.f32.mrb[0].mxu0
        %v759 = vadd.f32 %v490, %v758
        %v760 = vpop.f32.mrb[0].mxu0
        %761 = vdwg.mxu0
        %vm762 = vcmask 64512
        %763 = vst.msk [vmem:[%s447] sm:$0xff] %vm762, %v759
        %765 = vst.msk [vmem:[%s454] sm:$0xff] %vm507, %v689
        %s766 = scalar_lea.vmem %s403, 8 [#allocation4]
        %v767 = vld [vmem:[%s766] sm:$0xff]
        %v768 = vld [vmem:[%s3] sm:$0xff]
        %v769 = vld [vmem:[%s3 + $0x8] sm:$0xff]
        %v770 = vld [vmem:[%s3 + $0x10] sm:$0xff]
        %v771 = vld [vmem:[%s3 + $0x18] sm:$0xff]
        %v772 = vld [vmem:[#allocation9] sm:$0xff]
        %v773 = vld [vmem:[#allocation9 + $0x8] sm:$0xff]
        %v774 = vld [vmem:[#allocation9 + $0x10] sm:$0xff]
        %v775 = vld [vmem:[#allocation9 + $0x18] sm:$0xff]
        %v776 = vld [vmem:[#allocation9 + $0x20] sm:$0xff]
        %v777 = vld [vmem:[#allocation9 + $0x28] sm:$0xff]
        %v778 = vld [vmem:[#allocation9 + $0x30] sm:$0xff]
        %v779 = vld [vmem:[#allocation9 + $0x38] sm:$0xff]
        %780 = vmatprep.subr.mxu0 %v773
        %781 = vmatpush1.msra.mxu0 %v772
        %782 = vmatprep.subr.mxu0 %v775
        %783 = vmatpush1.msra.mxu0 %v774
        %784 = vmatprep.subr.mxu0 %v777
        %785 = vmatpush1.msra.mxu0 %v776
        %786 = vmatprep.subr.mxu0 %v779
        %787 = vmatpush1.msra.mxu0 %v778
        %788 = vmatprep.subr.mxu0 0.0
        %789 = vmatpush1.msra.mxu0 0.0
        %790 = vmatprep.subr.mxu0 0.0
        %791 = vmatpush1.msra.mxu0 0.0
        %792 = vmatprep.subr.mxu0 0.0
        %793 = vmatpush1.msra.mxu0 0.0
        %794 = vmatprep.subr.mxu0 0.0
        %795 = vmatpush1.msra.mxu0 0.0
        %796 = vmatprep.subr.mxu0 0.0
        %797 = vmatpush1.msra.mxu0 0.0
        %798 = vmatprep.subr.mxu0 0.0
        %799 = vmatpush1.msra.mxu0 0.0
        %800 = vmatprep.subr.mxu0 0.0
        %801 = vmatpush1.msra.mxu0 0.0
        %802 = vmatprep.subr.mxu0 0.0
        %803 = vmatpush1.msra.mxu0 0.0
        %804 = vmatprep.subr.mxu0 0.0
        %805 = vmatpush1.msra.mxu0 0.0
        %806 = vmatprep.subr.mxu0 0.0
        %807 = vmatpush1.msra.mxu0 0.0
        %808 = vmatprep.subr.mxu0 0.0
        %809 = vmatpush1.msra.mxu0 0.0
        %810 = vmatprep.subr.mxu0 0.0
        %811 = vmatpush1.msra.mxu0 0.0
        %812 = vmatprep.subr.mxu0 0.0
        %813 = vmatpush1.msra.mxu0 0.0
        %814 = vmatprep.subr.mxu0 0.0
        %815 = vmatpush1.msra.mxu0 0.0
        %816 = vmatprep.subr.mxu0 0.0
        %817 = vmatpush1.msra.mxu0 0.0
        %818 = vmatprep.subr.mxu0 0.0
        %819 = vmatpush1.msra.mxu0 0.0
        %820 = vmatprep.subr.mxu0 0.0
        %821 = vmatpush1.msra.mxu0 0.0
        %822 = vmatprep.subr.mxu0 0.0
        %823 = vmatpush1.msra.mxu0 0.0
        %824 = vmatprep.subr.mxu0 0.0
        %825 = vmatpush1.msra.mxu0 0.0
        %826 = vmatprep.subr.mxu0 0.0
        %827 = vmatpush1.msra.mxu0 0.0
        %828 = vmatprep.subr.mxu0 0.0
        %829 = vmatpush1.msra.mxu0 0.0
        %830 = vmatprep.subr.mxu0 0.0
        %831 = vmatpush1.msra.mxu0 0.0
        %832 = vmatprep.subr.mxu0 0.0
        %833 = vmatpush1.msra.mxu0 0.0
        %834 = vmatprep.subr.mxu0 0.0
        %835 = vmatpush1.msra.mxu0 0.0
        %836 = vmatprep.subr.mxu0 0.0
        %837 = vmatpush1.msra.mxu0 0.0
        %838 = vmatprep.subr.mxu0 0.0
        %839 = vmatpush1.msra.mxu0 0.0
        %840 = vmatprep.subr.mxu0 0.0
        %841 = vmatpush1.msra.mxu0 0.0
        %842 = vmatprep.subr.mxu0 0.0
        %843 = vmatpush1.msra.mxu0 0.0
        %844 = vmatprep.mubr.f32.mxu0 0.0
        %845 = vmatmul.mubr.f32.gmra.mrb[0].mxu0 %v690
        %v846 = vpop.f32.mrb[0].mxu0
        %v847 = vadd.f32 0.0, %v846
        %v848 = vpop.f32.mrb[0].mxu0
        %v849 = vadd.f32 0.0, %v848
        %850 = vdwg.mxu0
        %v852 = vsel %vm582, %v767, 0
        %854 = vmatprep.subr.mxu0 %v769
        %855 = vmatpush1.msra.mxu0 %v768
        %856 = vmatprep.subr.mxu0 %v771
        %857 = vmatpush1.msra.mxu0 %v770
        %858 = vmatprep.subr.mxu0 0.0
        %859 = vmatpush1.msra.mxu0 0.0
        %860 = vmatprep.subr.mxu0 0.0
        %861 = vmatpush1.msra.mxu0 0.0
        %862 = vmatprep.subr.mxu0 0.0
        %863 = vmatpush1.msra.mxu0 0.0
        %864 = vmatprep.subr.mxu0 0.0
        %865 = vmatpush1.msra.mxu0 0.0
        %866 = vmatprep.subr.mxu0 0.0
        %867 = vmatpush1.msra.mxu0 0.0
        %868 = vmatprep.subr.mxu0 0.0
        %869 = vmatpush1.msra.mxu0 0.0
        %870 = vmatprep.subr.mxu0 0.0
        %871 = vmatpush1.msra.mxu0 0.0
        %872 = vmatprep.subr.mxu0 0.0
        %873 = vmatpush1.msra.mxu0 0.0
        %874 = vmatprep.subr.mxu0 0.0
        %875 = vmatpush1.msra.mxu0 0.0
        %876 = vmatprep.subr.mxu0 0.0
        %877 = vmatpush1.msra.mxu0 0.0
        %878 = vmatprep.subr.mxu0 0.0
        %879 = vmatpush1.msra.mxu0 0.0
        %880 = vmatprep.subr.mxu0 0.0
        %881 = vmatpush1.msra.mxu0 0.0
        %882 = vmatprep.subr.mxu0 0.0
        %883 = vmatpush1.msra.mxu0 0.0
        %884 = vmatprep.subr.mxu0 0.0
        %885 = vmatpush1.msra.mxu0 0.0
        %886 = vmatprep.subr.mxu0 0.0
        %887 = vmatpush1.msra.mxu0 0.0
        %888 = vmatprep.subr.mxu0 0.0
        %889 = vmatpush1.msra.mxu0 0.0
        %890 = vmatprep.subr.mxu0 0.0
        %891 = vmatpush1.msra.mxu0 0.0
        %892 = vmatprep.subr.mxu0 0.0
        %893 = vmatpush1.msra.mxu0 0.0
        %894 = vmatprep.subr.mxu0 0.0
        %895 = vmatpush1.msra.mxu0 0.0
        %896 = vmatprep.subr.mxu0 0.0
        %897 = vmatpush1.msra.mxu0 0.0
        %898 = vmatprep.subr.mxu0 0.0
        %899 = vmatpush1.msra.mxu0 0.0
        %900 = vmatprep.subr.mxu0 0.0
        %901 = vmatpush1.msra.mxu0 0.0
        %902 = vmatprep.subr.mxu0 0.0
        %903 = vmatpush1.msra.mxu0 0.0
        %904 = vmatprep.subr.mxu0 0.0
        %905 = vmatpush1.msra.mxu0 0.0
        %906 = vmatprep.subr.mxu0 0.0
        %907 = vmatpush1.msra.mxu0 0.0
        %908 = vmatprep.subr.mxu0 0.0
        %909 = vmatpush1.msra.mxu0 0.0
        %910 = vmatprep.subr.mxu0 0.0
        %911 = vmatpush1.msra.mxu0 0.0
        %912 = vmatprep.subr.mxu0 0.0
        %913 = vmatpush1.msra.mxu0 0.0
        %914 = vmatprep.subr.mxu0 0.0
        %915 = vmatpush1.msra.mxu0 0.0
        %916 = vmatprep.subr.mxu0 0.0
        %917 = vmatpush1.msra.mxu0 0.0
        %918 = vmatprep.mubr.f32.mxu0 0.0
        %919 = vmatmul.mubr.f32.gmra.mrb[0].mxu0 %v852
        %v920 = vpop.f32.mrb[0].mxu0
        %v921 = vadd.f32 %v847, %v920
        %v922 = vpop.f32.mrb[0].mxu0
        %v923 = vadd.f32 %v849, %v922
        %924 = vdwg.mxu0
        %v925 = vadd.f32 %v921, %v478
        %v926 = vadd.f32 %v923, %v482
        %v927 = vxor.u32 %v925, 2147483648
        %v928 = vmul.f32 %v927, 1.442695
        %v929 = vpow.pop %v928
        %v930 = vadd.f32 %v929, 1.0
        %v931 = vrcp.pop %v930
        %v932 = vmul.f32 1.0, %v931
        %v933 = vtanh.pop %v926
        %v934 = vmul.f32 %v932, %v676
        %v935 = vmul.f32 %v932, %v933
        %937 = vrot.lane.b32.xlu0 %v935, 32
        %v938 = vpop.permute.xlu0 %937
        %v940 = vadd.f32 %v934, %v938
        %v941 = vtanh.pop %v940
        %943 = vrot.lane.b32.xlu0 %v941, 32
        %v944 = vpop.permute.xlu0 %943
        %v946 = vmul.f32 %v932, %v944
        %v947 = vld [vmem:[%s6] sm:$0xff]
        %v948 = vld [vmem:[%s6 + $0x8] sm:$0xff]
        %v949 = vld [vmem:[%s6 + $0x10] sm:$0xff]
        %v950 = vld [vmem:[%s6 + $0x18] sm:$0xff]
        %952 = vrot.lane.b32.xlu0 %v946, 64
        %v953 = vpop.permute.xlu0 %952
        %v954 = vsel %vm507, %v953, 0
        %956 = vmatprep.subr.mxu0 0.0
        %957 = vmatpush1.msra.mxu0 %v947
        %958 = vmatprep.subr.mxu0 0.0
        %959 = vmatpush1.msra.mxu0 %v948
        %960 = vmatprep.subr.mxu0 0.0
        %961 = vmatpush1.msra.mxu0 %v949
        %962 = vmatprep.subr.mxu0 0.0
        %963 = vmatpush1.msra.mxu0 %v950
        %964 = vmatprep.subr.mxu0 0.0
        %965 = vmatpush1.msra.mxu0 0.0
        %966 = vmatprep.subr.mxu0 0.0
        %967 = vmatpush1.msra.mxu0 0.0
        %968 = vmatprep.subr.mxu0 0.0
        %969 = vmatpush1.msra.mxu0 0.0
        %970 = vmatprep.subr.mxu0 0.0
        %971 = vmatpush1.msra.mxu0 0.0
        %972 = vmatprep.subr.mxu0 0.0
        %973 = vmatpush1.msra.mxu0 0.0
        %974 = vmatprep.subr.mxu0 0.0
        %975 = vmatpush1.msra.mxu0 0.0
        %976 = vmatprep.subr.mxu0 0.0
        %977 = vmatpush1.msra.mxu0 0.0
        %978 = vmatprep.subr.mxu0 0.0
        %979 = vmatpush1.msra.mxu0 0.0
        %980 = vmatprep.subr.mxu0 0.0
        %981 = vmatpush1.msra.mxu0 0.0
        %982 = vmatprep.subr.mxu0 0.0
        %983 = vmatpush1.msra.mxu0 0.0
        %984 = vmatprep.subr.mxu0 0.0
        %985 = vmatpush1.msra.mxu0 0.0
        %986 = vmatprep.subr.mxu0 0.0
        %987 = vmatpush1.msra.mxu0 0.0
        %988 = vmatprep.subr.mxu0 0.0
        %989 = vmatpush1.msra.mxu0 0.0
        %990 = vmatprep.subr.mxu0 0.0
        %991 = vmatpush1.msra.mxu0 0.0
        %992 = vmatprep.subr.mxu0 0.0
        %993 = vmatpush1.msra.mxu0 0.0
        %994 = vmatprep.subr.mxu0 0.0
        %995 = vmatpush1.msra.mxu0 0.0
        %996 = vmatprep.subr.mxu0 0.0
        %997 = vmatpush1.msra.mxu0 0.0
        %998 = vmatprep.subr.mxu0 0.0
        %999 = vmatpush1.msra.mxu0 0.0
        %1000 = vmatprep.subr.mxu0 0.0
        %1001 = vmatpush1.msra.mxu0 0.0
        %1002 = vmatprep.subr.mxu0 0.0
        %1003 = vmatpush1.msra.mxu0 0.0
        %1004 = vmatprep.subr.mxu0 0.0
        %1005 = vmatpush1.msra.mxu0 0.0
        %1006 = vmatprep.subr.mxu0 0.0
        %1007 = vmatpush1.msra.mxu0 0.0
        %1008 = vmatprep.subr.mxu0 0.0
        %1009 = vmatpush1.msra.mxu0 0.0
        %1010 = vmatprep.subr.mxu0 0.0
        %1011 = vmatpush1.msra.mxu0 0.0
        %1012 = vmatprep.subr.mxu0 0.0
        %1013 = vmatpush1.msra.mxu0 0.0
        %1014 = vmatprep.subr.mxu0 0.0
        %1015 = vmatpush1.msra.mxu0 0.0
        %1016 = vmatprep.subr.mxu0 0.0
        %1017 = vmatpush1.msra.mxu0 0.0
        %1018 = vmatprep.subr.mxu0 0.0
        %1019 = vmatpush1.msra.mxu0 0.0
        %1020 = vmatprep.mubr.f32.mxu0 0.0
        %1021 = vmatmul.mubr.f32.gmra.mrb[0].mxu0 %v954
        %v1022 = vpop.f32.mrb[0].mxu0
        %v1023 = vadd.f32 %v490, %v1022
        %v1024 = vpop.f32.mrb[0].mxu0
        %1025 = vdwg.mxu0
        %s1026 = scalar_lea.vmem %s447, 8 [#allocation10]
        %1027 = vst.msk [vmem:[%s1026] sm:$0xff] %vm762, %v1023
        %s1029 = scalar_lea.vmem %s454, 8 [#allocation11]
        %1030 = vst.msk [vmem:[%s1029] sm:$0xff] %vm507, %v953
        %s1031 = scalar_lea.vmem %s403, 16 [#allocation4]
        %v1032 = vld [vmem:[%s1031] sm:$0xff]
        %v1033 = vld [vmem:[%s3] sm:$0xff]
        %v1034 = vld [vmem:[%s3 + $0x8] sm:$0xff]
        %v1035 = vld [vmem:[%s3 + $0x10] sm:$0xff]
        %v1036 = vld [vmem:[%s3 + $0x18] sm:$0xff]
        %v1037 = vld [vmem:[#allocation9] sm:$0xff]
        %v1038 = vld [vmem:[#allocation9 + $0x8] sm:$0xff]
        %v1039 = vld [vmem:[#allocation9 + $0x10] sm:$0xff]
        %v1040 = vld [vmem:[#allocation9 + $0x18] sm:$0xff]
        %v1041 = vld [vmem:[#allocation9 + $0x20] sm:$0xff]
        %v1042 = vld [vmem:[#allocation9 + $0x28] sm:$0xff]
        %v1043 = vld [vmem:[#allocation9 + $0x30] sm:$0xff]
        %v1044 = vld [vmem:[#allocation9 + $0x38] sm:$0xff]
        %1045 = vmatprep.subr.mxu0 %v1038
        %1046 = vmatpush1.msra.mxu0 %v1037
        %1047 = vmatprep.subr.mxu0 %v1040
        %1048 = vmatpush1.msra.mxu0 %v1039
        %1049 = vmatprep.subr.mxu0 %v1042
        %1050 = vmatpush1.msra.mxu0 %v1041
        %1051 = vmatprep.subr.mxu0 %v1044
        %1052 = vmatpush1.msra.mxu0 %v1043
        %1053 = vmatprep.subr.mxu0 0.0
        %1054 = vmatpush1.msra.mxu0 0.0
        %1055 = vmatprep.subr.mxu0 0.0
        %1056 = vmatpush1.msra.mxu0 0.0
        %1057 = vmatprep.subr.mxu0 0.0
        %1058 = vmatpush1.msra.mxu0 0.0
        %1059 = vmatprep.subr.mxu0 0.0
        %1060 = vmatpush1.msra.mxu0 0.0
        %1061 = vmatprep.subr.mxu0 0.0
        %1062 = vmatpush1.msra.mxu0 0.0
        %1063 = vmatprep.subr.mxu0 0.0
        %1064 = vmatpush1.msra.mxu0 0.0
        %1065 = vmatprep.subr.mxu0 0.0
        %1066 = vmatpush1.msra.mxu0 0.0
        %1067 = vmatprep.subr.mxu0 0.0
        %1068 = vmatpush1.msra.mxu0 0.0
        %1069 = vmatprep.subr.mxu0 0.0
        %1070 = vmatpush1.msra.mxu0 0.0
        %1071 = vmatprep.subr.mxu0 0.0
        %1072 = vmatpush1.msra.mxu0 0.0
        %1073 = vmatprep.subr.mxu0 0.0
        %1074 = vmatpush1.msra.mxu0 0.0
        %1075 = vmatprep.subr.mxu0 0.0
        %1076 = vmatpush1.msra.mxu0 0.0
        %1077 = vmatprep.subr.mxu0 0.0
        %1078 = vmatpush1.msra.mxu0 0.0
        %1079 = vmatprep.subr.mxu0 0.0
        %1080 = vmatpush1.msra.mxu0 0.0
        %1081 = vmatprep.subr.mxu0 0.0
        %1082 = vmatpush1.msra.mxu0 0.0
        %1083 = vmatprep.subr.mxu0 0.0
        %1084 = vmatpush1.msra.mxu0 0.0
        %1085 = vmatprep.subr.mxu0 0.0
        %1086 = vmatpush1.msra.mxu0 0.0
        %1087 = vmatprep.subr.mxu0 0.0
        %1088 = vmatpush1.msra.mxu0 0.0
        %1089 = vmatprep.subr.mxu0 0.0
        %1090 = vmatpush1.msra.mxu0 0.0
        %1091 = vmatprep.subr.mxu0 0.0
        %1092 = vmatpush1.msra.mxu0 0.0
        %1093 = vmatprep.subr.mxu0 0.0
        %1094 = vmatpush1.msra.mxu0 0.0
        %1095 = vmatprep.subr.mxu0 0.0
        %1096 = vmatpush1.msra.mxu0 0.0
        %1097 = vmatprep.subr.mxu0 0.0
        %1098 = vmatpush1.msra.mxu0 0.0
        %1099 = vmatprep.subr.mxu0 0.0
        %1100 = vmatpush1.msra.mxu0 0.0
        %1101 = vmatprep.subr.mxu0 0.0
        %1102 = vmatpush1.msra.mxu0 0.0
        %1103 = vmatprep.subr.mxu0 0.0
        %1104 = vmatpush1.msra.mxu0 0.0
        %1105 = vmatprep.subr.mxu0 0.0
        %1106 = vmatpush1.msra.mxu0 0.0
        %1107 = vmatprep.subr.mxu0 0.0
        %1108 = vmatpush1.msra.mxu0 0.0
        %1109 = vmatprep.mubr.f32.mxu0 0.0
        %1110 = vmatmul.mubr.f32.gmra.mrb[0].mxu0 %v954
        %v1111 = vpop.f32.mrb[0].mxu0
        %v1112 = vadd.f32 0.0, %v1111
        %v1113 = vpop.f32.mrb[0].mxu0
        %v1114 = vadd.f32 0.0, %v1113
        %1115 = vdwg.mxu0
        %v1117 = vsel %vm582, %v1032, 0
        %1119 = vmatprep.subr.mxu0 %v1034
        %1120 = vmatpush1.msra.mxu0 %v1033
        %1121 = vmatprep.subr.mxu0 %v1036
        %1122 = vmatpush1.msra.mxu0 %v1035
        %1123 = vmatprep.subr.mxu0 0.0
        %1124 = vmatpush1.msra.mxu0 0.0
        %1125 = vmatprep.subr.mxu0 0.0
        %1126 = vmatpush1.msra.mxu0 0.0
        %1127 = vmatprep.subr.mxu0 0.0
        %1128 = vmatpush1.msra.mxu0 0.0
        %1129 = vmatprep.subr.mxu0 0.0
        %1130 = vmatpush1.msra.mxu0 0.0
        %1131 = vmatprep.subr.mxu0 0.0
        %1132 = vmatpush1.msra.mxu0 0.0
        %1133 = vmatprep.subr.mxu0 0.0
        %1134 = vmatpush1.msra.mxu0 0.0
        %1135 = vmatprep.subr.mxu0 0.0
        %1136 = vmatpush1.msra.mxu0 0.0
        %1137 = vmatprep.subr.mxu0 0.0
        %1138 = vmatpush1.msra.mxu0 0.0
        %1139 = vmatprep.subr.mxu0 0.0
        %1140 = vmatpush1.msra.mxu0 0.0
        %1141 = vmatprep.subr.mxu0 0.0
        %1142 = vmatpush1.msra.mxu0 0.0
        %1143 = vmatprep.subr.mxu0 0.0
        %1144 = vmatpush1.msra.mxu0 0.0
        %1145 = vmatprep.subr.mxu0 0.0
        %1146 = vmatpush1.msra.mxu0 0.0
        %1147 = vmatprep.subr.mxu0 0.0
        %1148 = vmatpush1.msra.mxu0 0.0
        %1149 = vmatprep.subr.mxu0 0.0
        %1150 = vmatpush1.msra.mxu0 0.0
        %1151 = vmatprep.subr.mxu0 0.0
        %1152 = vmatpush1.msra.mxu0 0.0
        %1153 = vmatprep.subr.mxu0 0.0
        %1154 = vmatpush1.msra.mxu0 0.0
        %1155 = vmatprep.subr.mxu0 0.0
        %1156 = vmatpush1.msra.mxu0 0.0
        %1157 = vmatprep.subr.mxu0 0.0
        %1158 = vmatpush1.msra.mxu0 0.0
        %1159 = vmatprep.subr.mxu0 0.0
        %1160 = vmatpush1.msra.mxu0 0.0
        %1161 = vmatprep.subr.mxu0 0.0
        %1162 = vmatpush1.msra.mxu0 0.0
        %1163 = vmatprep.subr.mxu0 0.0
        %1164 = vmatpush1.msra.mxu0 0.0
        %1165 = vmatprep.subr.mxu0 0.0
        %1166 = vmatpush1.msra.mxu0 0.0
        %1167 = vmatprep.subr.mxu0 0.0
        %1168 = vmatpush1.msra.mxu0 0.0
        %1169 = vmatprep.subr.mxu0 0.0
        %1170 = vmatpush1.msra.mxu0 0.0
        %1171 = vmatprep.subr.mxu0 0.0
        %1172 = vmatpush1.msra.mxu0 0.0
        %1173 = vmatprep.subr.mxu0 0.0
        %1174 = vmatpush1.msra.mxu0 0.0
        %1175 = vmatprep.subr.mxu0 0.0
        %1176 = vmatpush1.msra.mxu0 0.0
        %1177 = vmatprep.subr.mxu0 0.0
        %1178 = vmatpush1.msra.mxu0 0.0
        %1179 = vmatprep.subr.mxu0 0.0
        %1180 = vmatpush1.msra.mxu0 0.0
        %1181 = vmatprep.subr.mxu0 0.0
        %1182 = vmatpush1.msra.mxu0 0.0
        %1183 = vmatprep.mubr.f32.mxu0 0.0
        %1184 = vmatmul.mubr.f32.gmra.mrb[0].mxu0 %v1117
        %v1185 = vpop.f32.mrb[0].mxu0
        %v1186 = vadd.f32 %v1112, %v1185
        %v1187 = vpop.f32.mrb[0].mxu0
        %v1188 = vadd.f32 %v1114, %v1187
        %1189 = vdwg.mxu0
        %v1190 = vadd.f32 %v1186, %v478
        %v1191 = vadd.f32 %v1188, %v482
        %v1192 = vxor.u32 %v1190, 2147483648
        %v1193 = vmul.f32 %v1192, 1.442695
        %v1194 = vpow.pop %v1193
        %v1195 = vadd.f32 %v1194, 1.0
        %v1196 = vrcp.pop %v1195
        %v1197 = vmul.f32 1.0, %v1196
        %v1198 = vtanh.pop %v1191
        %v1199 = vmul.f32 %v1197, %v940
        %v1200 = vmul.f32 %v1197, %v1198
        %1202 = vrot.lane.b32.xlu0 %v1200, 32
        %v1203 = vpop.permute.xlu0 %1202
        %v1205 = vadd.f32 %v1199, %v1203
        %v1206 = vtanh.pop %v1205
        %1208 = vrot.lane.b32.xlu0 %v1206, 32
        %v1209 = vpop.permute.xlu0 %1208
        %v1211 = vmul.f32 %v1197, %v1209
        %v1212 = vld [vmem:[%s6] sm:$0xff]
        %v1213 = vld [vmem:[%s6 + $0x8] sm:$0xff]
        %v1214 = vld [vmem:[%s6 + $0x10] sm:$0xff]
        %v1215 = vld [vmem:[%s6 + $0x18] sm:$0xff]
        %1217 = vrot.lane.b32.xlu0 %v1211, 64
        %v1218 = vpop.permute.xlu0 %1217
        %v1219 = vsel %vm507, %v1218, 0
        %1221 = vmatprep.subr.mxu0 0.0
        %1222 = vmatpush1.msra.mxu0 %v1212
        %1223 = vmatprep.subr.mxu0 0.0
        %1224 = vmatpush1.msra.mxu0 %v1213
        %1225 = vmatprep.subr.mxu0 0.0
        %1226 = vmatpush1.msra.mxu0 %v1214
        %1227 = vmatprep.subr.mxu0 0.0
        %1228 = vmatpush1.msra.mxu0 %v1215
        %1229 = vmatprep.subr.mxu0 0.0
        %1230 = vmatpush1.msra.mxu0 0.0
        %1231 = vmatprep.subr.mxu0 0.0
        %1232 = vmatpush1.msra.mxu0 0.0
        %1233 = vmatprep.subr.mxu0 0.0
        %1234 = vmatpush1.msra.mxu0 0.0
        %1235 = vmatprep.subr.mxu0 0.0
        %1236 = vmatpush1.msra.mxu0 0.0
        %1237 = vmatprep.subr.mxu0 0.0
        %1238 = vmatpush1.msra.mxu0 0.0
        %1239 = vmatprep.subr.mxu0 0.0
        %1240 = vmatpush1.msra.mxu0 0.0
        %1241 = vmatprep.subr.mxu0 0.0
        %1242 = vmatpush1.msra.mxu0 0.0
        %1243 = vmatprep.subr.mxu0 0.0
        %1244 = vmatpush1.msra.mxu0 0.0
        %1245 = vmatprep.subr.mxu0 0.0
        %1246 = vmatpush1.msra.mxu0 0.0
        %1247 = vmatprep.subr.mxu0 0.0
        %1248 = vmatpush1.msra.mxu0 0.0
        %1249 = vmatprep.subr.mxu0 0.0
        %1250 = vmatpush1.msra.mxu0 0.0
        %1251 = vmatprep.subr.mxu0 0.0
        %1252 = vmatpush1.msra.mxu0 0.0
        %1253 = vmatprep.subr.mxu0 0.0
        %1254 = vmatpush1.msra.mxu0 0.0
        %1255 = vmatprep.subr.mxu0 0.0
        %1256 = vmatpush1.msra.mxu0 0.0
        %1257 = vmatprep.subr.mxu0 0.0
        %1258 = vmatpush1.msra.mxu0 0.0
        %1259 = vmatprep.subr.mxu0 0.0
        %1260 = vmatpush1.msra.mxu0 0.0
        %1261 = vmatprep.subr.mxu0 0.0
        %1262 = vmatpush1.msra.mxu0 0.0
        %1263 = vmatprep.subr.mxu0 0.0
        %1264 = vmatpush1.msra.mxu0 0.0
        %1265 = vmatprep.subr.mxu0 0.0
        %1266 = vmatpush1.msra.mxu0 0.0
        %1267 = vmatprep.subr.mxu0 0.0
        %1268 = vmatpush1.msra.mxu0 0.0
        %1269 = vmatprep.subr.mxu0 0.0
        %1270 = vmatpush1.msra.mxu0 0.0
        %1271 = vmatprep.subr.mxu0 0.0
        %1272 = vmatpush1.msra.mxu0 0.0
        %1273 = vmatprep.subr.mxu0 0.0
        %1274 = vmatpush1.msra.mxu0 0.0
        %1275 = vmatprep.subr.mxu0 0.0
        %1276 = vmatpush1.msra.mxu0 0.0
        %1277 = vmatprep.subr.mxu0 0.0
        %1278 = vmatpush1.msra.mxu0 0.0
        %1279 = vmatprep.subr.mxu0 0.0
        %1280 = vmatpush1.msra.mxu0 0.0
        %1281 = vmatprep.subr.mxu0 0.0
        %1282 = vmatpush1.msra.mxu0 0.0
        %1283 = vmatprep.subr.mxu0 0.0
        %1284 = vmatpush1.msra.mxu0 0.0
        %1285 = vmatprep.mubr.f32.mxu0 0.0
        %1286 = vmatmul.mubr.f32.gmra.mrb[0].mxu0 %v1219
        %v1287 = vpop.f32.mrb[0].mxu0
        %v1288 = vadd.f32 %v490, %v1287
        %v1289 = vpop.f32.mrb[0].mxu0
        %1290 = vdwg.mxu0
        %s1291 = scalar_lea.vmem %s447, 16 [#allocation10]
        %1292 = vst.msk [vmem:[%s1291] sm:$0xff] %vm762, %v1288
        %s1294 = scalar_lea.vmem %s454, 16 [#allocation11]
        %1295 = vst.msk [vmem:[%s1294] sm:$0xff] %vm507, %v1218
        %s1296 = scalar_lea.vmem %s403, 24 [#allocation4]
        %v1297 = vld [vmem:[%s1296] sm:$0xff]
        %v1298 = vld [vmem:[%s3] sm:$0xff]
        %v1299 = vld [vmem:[%s3 + $0x8] sm:$0xff]
        %v1300 = vld [vmem:[%s3 + $0x10] sm:$0xff]
        %v1301 = vld [vmem:[%s3 + $0x18] sm:$0xff]
        %v1302 = vld [vmem:[#allocation9] sm:$0xff]
        %v1303 = vld [vmem:[#allocation9 + $0x8] sm:$0xff]
        %v1304 = vld [vmem:[#allocation9 + $0x10] sm:$0xff]
        %v1305 = vld [vmem:[#allocation9 + $0x18] sm:$0xff]
        %v1306 = vld [vmem:[#allocation9 + $0x20] sm:$0xff]
        %v1307 = vld [vmem:[#allocation9 + $0x28] sm:$0xff]
        %v1308 = vld [vmem:[#allocation9 + $0x30] sm:$0xff]
        %v1309 = vld [vmem:[#allocation9 + $0x38] sm:$0xff]
        %1310 = vmatprep.subr.mxu0 %v1303
        %1311 = vmatpush1.msra.mxu0 %v1302
        %1312 = vmatprep.subr.mxu0 %v1305
        %1313 = vmatpush1.msra.mxu0 %v1304
        %1314 = vmatprep.subr.mxu0 %v1307
        %1315 = vmatpush1.msra.mxu0 %v1306
        %1316 = vmatprep.subr.mxu0 %v1309
        %1317 = vmatpush1.msra.mxu0 %v1308
        %1318 = vmatprep.subr.mxu0 0.0
        %1319 = vmatpush1.msra.mxu0 0.0
        %1320 = vmatprep.subr.mxu0 0.0
        %1321 = vmatpush1.msra.mxu0 0.0
        %1322 = vmatprep.subr.mxu0 0.0
        %1323 = vmatpush1.msra.mxu0 0.0
        %1324 = vmatprep.subr.mxu0 0.0
        %1325 = vmatpush1.msra.mxu0 0.0
        %1326 = vmatprep.subr.mxu0 0.0
        %1327 = vmatpush1.msra.mxu0 0.0
        %1328 = vmatprep.subr.mxu0 0.0
        %1329 = vmatpush1.msra.mxu0 0.0
        %1330 = vmatprep.subr.mxu0 0.0
        %1331 = vmatpush1.msra.mxu0 0.0
        %1332 = vmatprep.subr.mxu0 0.0
        %1333 = vmatpush1.msra.mxu0 0.0
        %1334 = vmatprep.subr.mxu0 0.0
        %1335 = vmatpush1.msra.mxu0 0.0
        %1336 = vmatprep.subr.mxu0 0.0
        %1337 = vmatpush1.msra.mxu0 0.0
        %1338 = vmatprep.subr.mxu0 0.0
        %1339 = vmatpush1.msra.mxu0 0.0
        %1340 = vmatprep.subr.mxu0 0.0
        %1341 = vmatpush1.msra.mxu0 0.0
        %1342 = vmatprep.subr.mxu0 0.0
        %1343 = vmatpush1.msra.mxu0 0.0
        %1344 = vmatprep.subr.mxu0 0.0
        %1345 = vmatpush1.msra.mxu0 0.0
        %1346 = vmatprep.subr.mxu0 0.0
        %1347 = vmatpush1.msra.mxu0 0.0
        %1348 = vmatprep.subr.mxu0 0.0
        %1349 = vmatpush1.msra.mxu0 0.0
        %1350 = vmatprep.subr.mxu0 0.0
        %1351 = vmatpush1.msra.mxu0 0.0
        %1352 = vmatprep.subr.mxu0 0.0
        %1353 = vmatpush1.msra.mxu0 0.0
        %1354 = vmatprep.subr.mxu0 0.0
        %1355 = vmatpush1.msra.mxu0 0.0
        %1356 = vmatprep.subr.mxu0 0.0
        %1357 = vmatpush1.msra.mxu0 0.0
        %1358 = vmatprep.subr.mxu0 0.0
        %1359 = vmatpush1.msra.mxu0 0.0
        %1360 = vmatprep.subr.mxu0 0.0
        %1361 = vmatpush1.msra.mxu0 0.0
        %1362 = vmatprep.subr.mxu0 0.0
        %1363 = vmatpush1.msra.mxu0 0.0
        %1364 = vmatprep.subr.mxu0 0.0
        %1365 = vmatpush1.msra.mxu0 0.0
        %1366 = vmatprep.subr.mxu0 0.0
        %1367 = vmatpush1.msra.mxu0 0.0
        %1368 = vmatprep.subr.mxu0 0.0
        %1369 = vmatpush1.msra.mxu0 0.0
        %1370 = vmatprep.subr.mxu0 0.0
        %1371 = vmatpush1.msra.mxu0 0.0
        %1372 = vmatprep.subr.mxu0 0.0
        %1373 = vmatpush1.msra.mxu0 0.0
        %1374 = vmatprep.mubr.f32.mxu0 0.0
        %1375 = vmatmul.mubr.f32.gmra.mrb[0].mxu0 %v1219
        %v1376 = vpop.f32.mrb[0].mxu0
        %v1377 = vadd.f32 0.0, %v1376
        %v1378 = vpop.f32.mrb[0].mxu0
        %v1379 = vadd.f32 0.0, %v1378
        %1380 = vdwg.mxu0
        %v1382 = vsel %vm582, %v1297, 0
        %1384 = vmatprep.subr.mxu0 %v1299
        %1385 = vmatpush1.msra.mxu0 %v1298
        %1386 = vmatprep.subr.mxu0 %v1301
        %1387 = vmatpush1.msra.mxu0 %v1300
        %1388 = vmatprep.subr.mxu0 0.0
        %1389 = vmatpush1.msra.mxu0 0.0
        %1390 = vmatprep.subr.mxu0 0.0
        %1391 = vmatpush1.msra.mxu0 0.0
        %1392 = vmatprep.subr.mxu0 0.0
        %1393 = vmatpush1.msra.mxu0 0.0
        %1394 = vmatprep.subr.mxu0 0.0
        %1395 = vmatpush1.msra.mxu0 0.0
        %1396 = vmatprep.subr.mxu0 0.0
        %1397 = vmatpush1.msra.mxu0 0.0
        %1398 = vmatprep.subr.mxu0 0.0
        %1399 = vmatpush1.msra.mxu0 0.0
        %1400 = vmatprep.subr.mxu0 0.0
        %1401 = vmatpush1.msra.mxu0 0.0
        %1402 = vmatprep.subr.mxu0 0.0
        %1403 = vmatpush1.msra.mxu0 0.0
        %1404 = vmatprep.subr.mxu0 0.0
        %1405 = vmatpush1.msra.mxu0 0.0
        %1406 = vmatprep.subr.mxu0 0.0
        %1407 = vmatpush1.msra.mxu0 0.0
        %1408 = vmatprep.subr.mxu0 0.0
        %1409 = vmatpush1.msra.mxu0 0.0
        %1410 = vmatprep.subr.mxu0 0.0
        %1411 = vmatpush1.msra.mxu0 0.0
        %1412 = vmatprep.subr.mxu0 0.0
        %1413 = vmatpush1.msra.mxu0 0.0
        %1414 = vmatprep.subr.mxu0 0.0
        %1415 = vmatpush1.msra.mxu0 0.0
        %1416 = vmatprep.subr.mxu0 0.0
        %1417 = vmatpush1.msra.mxu0 0.0
        %1418 = vmatprep.subr.mxu0 0.0
        %1419 = vmatpush1.msra.mxu0 0.0
        %1420 = vmatprep.subr.mxu0 0.0
        %1421 = vmatpush1.msra.mxu0 0.0
        %1422 = vmatprep.subr.mxu0 0.0
        %1423 = vmatpush1.msra.mxu0 0.0
        %1424 = vmatprep.subr.mxu0 0.0
        %1425 = vmatpush1.msra.mxu0 0.0
        %1426 = vmatprep.subr.mxu0 0.0
        %1427 = vmatpush1.msra.mxu0 0.0
        %1428 = vmatprep.subr.mxu0 0.0
        %1429 = vmatpush1.msra.mxu0 0.0
        %1430 = vmatprep.subr.mxu0 0.0
        %1431 = vmatpush1.msra.mxu0 0.0
        %1432 = vmatprep.subr.mxu0 0.0
        %1433 = vmatpush1.msra.mxu0 0.0
        %1434 = vmatprep.subr.mxu0 0.0
        %1435 = vmatpush1.msra.mxu0 0.0
        %1436 = vmatprep.subr.mxu0 0.0
        %1437 = vmatpush1.msra.mxu0 0.0
        %1438 = vmatprep.subr.mxu0 0.0
        %1439 = vmatpush1.msra.mxu0 0.0
        %1440 = vmatprep.subr.mxu0 0.0
        %1441 = vmatpush1.msra.mxu0 0.0
        %1442 = vmatprep.subr.mxu0 0.0
        %1443 = vmatpush1.msra.mxu0 0.0
        %1444 = vmatprep.subr.mxu0 0.0
        %1445 = vmatpush1.msra.mxu0 0.0
        %1446 = vmatprep.subr.mxu0 0.0
        %1447 = vmatpush1.msra.mxu0 0.0
        %1448 = vmatprep.mubr.f32.mxu0 0.0
        %1449 = vmatmul.mubr.f32.gmra.mrb[0].mxu0 %v1382
        %v1450 = vpop.f32.mrb[0].mxu0
        %v1451 = vadd.f32 %v1377, %v1450
        %v1452 = vpop.f32.mrb[0].mxu0
        %v1453 = vadd.f32 %v1379, %v1452
        %1454 = vdwg.mxu0
        %v1455 = vadd.f32 %v1451, %v478
        %v1456 = vadd.f32 %v1453, %v482
        %v1457 = vxor.u32 %v1455, 2147483648
        %v1458 = vmul.f32 %v1457, 1.442695
        %v1459 = vpow.pop %v1458
        %v1460 = vadd.f32 %v1459, 1.0
        %v1461 = vrcp.pop %v1460
        %v1462 = vmul.f32 1.0, %v1461
        %v1463 = vtanh.pop %v1456
        %v1464 = vmul.f32 %v1462, %v1205
        %v1465 = vmul.f32 %v1462, %v1463
        %1467 = vrot.lane.b32.xlu0 %v1465, 32
        %v1468 = vpop.permute.xlu0 %1467
        %v1470 = vadd.f32 %v1464, %v1468
        %v1471 = vtanh.pop %v1470
        %1473 = vrot.lane.b32.xlu0 %v1471, 32
        %v1474 = vpop.permute.xlu0 %1473
        %v1476 = vmul.f32 %v1462, %v1474
        %v1477 = vld [vmem:[%s6] sm:$0xff]
        %v1478 = vld [vmem:[%s6 + $0x8] sm:$0xff]
        %v1479 = vld [vmem:[%s6 + $0x10] sm:$0xff]
        %v1480 = vld [vmem:[%s6 + $0x18] sm:$0xff]
        %1482 = vrot.lane.b32.xlu0 %v1476, 64
        %v1483 = vpop.permute.xlu0 %1482
        %v1484 = vsel %vm507, %v1483, 0
        %1486 = vmatprep.subr.mxu0 0.0
        %1487 = vmatpush1.msra.mxu0 %v1477
        %1488 = vmatprep.subr.mxu0 0.0
        %1489 = vmatpush1.msra.mxu0 %v1478
        %1490 = vmatprep.subr.mxu0 0.0
        %1491 = vmatpush1.msra.mxu0 %v1479
        %1492 = vmatprep.subr.mxu0 0.0
        %1493 = vmatpush1.msra.mxu0 %v1480
        %1494 = vmatprep.subr.mxu0 0.0
        %1495 = vmatpush1.msra.mxu0 0.0
        %1496 = vmatprep.subr.mxu0 0.0
        %1497 = vmatpush1.msra.mxu0 0.0
        %1498 = vmatprep.subr.mxu0 0.0
        %1499 = vmatpush1.msra.mxu0 0.0
        %1500 = vmatprep.subr.mxu0 0.0
        %1501 = vmatpush1.msra.mxu0 0.0
        %1502 = vmatprep.subr.mxu0 0.0
        %1503 = vmatpush1.msra.mxu0 0.0
        %1504 = vmatprep.subr.mxu0 0.0
        %1505 = vmatpush1.msra.mxu0 0.0
        %1506 = vmatprep.subr.mxu0 0.0
        %1507 = vmatpush1.msra.mxu0 0.0
        %1508 = vmatprep.subr.mxu0 0.0
        %1509 = vmatpush1.msra.mxu0 0.0
        %1510 = vmatprep.subr.mxu0 0.0
        %1511 = vmatpush1.msra.mxu0 0.0
        %1512 = vmatprep.subr.mxu0 0.0
        %1513 = vmatpush1.msra.mxu0 0.0
        %1514 = vmatprep.subr.mxu0 0.0
        %1515 = vmatpush1.msra.mxu0 0.0
        %1516 = vmatprep.subr.mxu0 0.0
        %1517 = vmatpush1.msra.mxu0 0.0
        %1518 = vmatprep.subr.mxu0 0.0
        %1519 = vmatpush1.msra.mxu0 0.0
        %1520 = vmatprep.subr.mxu0 0.0
        %1521 = vmatpush1.msra.mxu0 0.0
        %1522 = vmatprep.subr.mxu0 0.0
        %1523 = vmatpush1.msra.mxu0 0.0
        %1524 = vmatprep.subr.mxu0 0.0
        %1525 = vmatpush1.msra.mxu0 0.0
        %1526 = vmatprep.subr.mxu0 0.0
        %1527 = vmatpush1.msra.mxu0 0.0
        %1528 = vmatprep.subr.mxu0 0.0
        %1529 = vmatpush1.msra.mxu0 0.0
        %1530 = vmatprep.subr.mxu0 0.0
        %1531 = vmatpush1.msra.mxu0 0.0
        %1532 = vmatprep.subr.mxu0 0.0
        %1533 = vmatpush1.msra.mxu0 0.0
        %1534 = vmatprep.subr.mxu0 0.0
        %1535 = vmatpush1.msra.mxu0 0.0
        %1536 = vmatprep.subr.mxu0 0.0
        %1537 = vmatpush1.msra.mxu0 0.0
        %1538 = vmatprep.subr.mxu0 0.0
        %1539 = vmatpush1.msra.mxu0 0.0
        %1540 = vmatprep.subr.mxu0 0.0
        %1541 = vmatpush1.msra.mxu0 0.0
        %1542 = vmatprep.subr.mxu0 0.0
        %1543 = vmatpush1.msra.mxu0 0.0
        %1544 = vmatprep.subr.mxu0 0.0
        %1545 = vmatpush1.msra.mxu0 0.0
        %1546 = vmatprep.subr.mxu0 0.0
        %1547 = vmatpush1.msra.mxu0 0.0
        %1548 = vmatprep.subr.mxu0 0.0
        %1549 = vmatpush1.msra.mxu0 0.0
        %1550 = vmatprep.mubr.f32.mxu0 0.0
        %1551 = vmatmul.mubr.f32.gmra.mrb[0].mxu0 %v1484
        %v1552 = vpop.f32.mrb[0].mxu0
        %v1553 = vadd.f32 %v490, %v1552
        %v1554 = vpop.f32.mrb[0].mxu0
        %1555 = vdwg.mxu0
        %s1556 = scalar_lea.vmem %s447, 24 [#allocation10]
        %1557 = vst.msk [vmem:[%s1556] sm:$0xff] %vm762, %v1553
        %s1559 = scalar_lea.vmem %s454, 24 [#allocation11]
        %1560 = vst.msk [vmem:[%s1559] sm:$0xff] %vm507, %v1483
        %1561 = vst.msk [vmem:[#allocation2] sm:$0xff] %vm507, %v1483
        %1563 = vrot.lane.b32.xlu0 %v1470, 96
        %v1564 = vpop.permute.xlu0 %1563
        %1566 = vst.msk [vmem:[#allocation3] sm:$0xff] %vm507, %v1564
        %p1567 = scmp.eq.s32.totalorder %s37, 1
        // Predicated region
        $region69: #{tpu_custom_call.1} parent=51 // pred_check
          %p1568 = pneg %p1567
        $region70: #{tpu_custom_call.1} parent=51 // pred_check_branch
          %1570 = sbr.rel (%p1568) target = $region72
        $region71: #{tpu_custom_call.1} parent=51 // pred_region
          %1571 = vst.msk [vmem:[#allocation13] sm:$0xff] %vm507, %v1564
        $region72: #{tpu_custom_call.1} parent=51 // pred_fallthru
          _
        %s1572 = sand.u32 %s239, 1
        %s1573 = scalar_lea.sflag [#allocation6], %s1572
        %s1574 = sand.u32 %s239, 1
        %s1575 = smul.addr %s1574, 32
        %s1576 = scalar_lea.vmem [#allocation10], %s1575
        %s1577 = sand.u32 %s32, 1
        %s1578 = scalar_lea.sflag [#allocation12], %s1577
        %s1579 = sand.u32 %s267, 1
        %s1580 = smul.addr %s1579, 32
        %s1581 = scalar_lea.vmem [#allocation11], %s1580
        // Predicated region
        $region73: #{tpu_custom_call.1} parent=51 // pred_check
          %p1582 = pneg %p249
        $region74: #{tpu_custom_call.1} parent=51 // pred_check_branch
          %1584 = sbr.rel (%p1582) target = $region76
        $region75: #{tpu_custom_call.1} parent=51 // pred_region
          %s1585 = smul.u32 4, %s37
          %s1587 = ssub.s32 512, 512
          %1588 = vsyncadd %s1573, %s1587
          %s1589 = sadd.s32 %s36, %s1585
          %s1590 = smul.addr %s1589, 128
          %s1591 = scalar_lea.hbm %s8, %s1590
          %s1592 = sshll.u32 %s1576, 4
          %s1593 = int_to_ptr.vmem [resolvable:$true] %s1592
          %1598 = dma.vmem_to_hbm [thread:$0]  %s1593, 512, %s1591, %s1573, 128, 128, 8
        $region76: #{tpu_custom_call.1} parent=51 // pred_fallthru
          _
        // Predicated region
        $region77: #{tpu_custom_call.1} parent=51 // pred_check
          %p1599 = pneg %p277
        $region78: #{tpu_custom_call.1} parent=51 // pred_check_branch
          %1601 = sbr.rel (%p1599) target = $region80
        $region79: #{tpu_custom_call.1} parent=51 // pred_region
          %s1602 = smul.u32 4, %s37
          %s1604 = ssub.s32 512, 512
          %1605 = vsyncadd %s1578, %s1604
          %s1606 = sadd.s32 %s36, %s1602
          %s1607 = smul.addr %s1606, 128
          %s1608 = scalar_lea.hbm %s9, %s1607
          %s1609 = sshll.u32 %s1581, 4
          %s1610 = int_to_ptr.vmem [resolvable:$true] %s1609
          %1615 = dma.vmem_to_hbm [thread:$0]  %s1610, 512, %s1608, %s1578, 128, 128, 8
        $region80: #{tpu_custom_call.1} parent=51 // pred_fallthru
          _
        // Predicated region
        $region81: #{tpu_custom_call.1} parent=51 // pred_check
          %p1616 = pneg %p303
        $region82: #{tpu_custom_call.1} parent=51 // pred_check_branch
          %1618 = sbr.rel (%p1616) target = $region84
        $region83: #{tpu_custom_call.1} parent=51 // pred_region
          %s1620 = ssub.s32 128, 128
          %1621 = vsyncadd [#allocation12], %s1620
          %s1622 = smul.addr %s36, 128
          %s1623 = scalar_lea.hbm %s10, %s1622
          %s1625 = sshll.u32 [#allocation13], 4
          %s1626 = int_to_ptr.vmem [resolvable:$true] %s1625
          %1628 = dma.vmem_to_hbm [thread:$0]  %s1626, 128, %s1623, [#allocation12]
        $region84: #{tpu_custom_call.1} parent=51 // pred_fallthru
          _
        // Predicated region
        $region85: #{tpu_custom_call.1} parent=51 // pred_check
          %p1629 = pneg %p303
        $region86: #{tpu_custom_call.1} parent=51 // pred_check_branch
          %1631 = sbr.rel (%p1629) target = $region88
        $region87: #{tpu_custom_call.1} parent=51 // pred_region
          %1632 = dma.done [#allocation12], 128
        $region88: #{tpu_custom_call.1} parent=51 // pred_fallthru
          _
      $region52: #{tpu_custom_call.1} parent=5 // pred_fallthru
        _
      %p1633 = scmp.le.s32.totalorder 2, %s27
      // Predicated region
      $region89: #{tpu_custom_call.1} parent=5 // pred_check
        %p1634 = pneg %p1633
      $region90: #{tpu_custom_call.1} parent=5 // pred_check_branch
        %1636 = sbr.rel (%p1634) target = $region92
      $region91: #{tpu_custom_call.1} parent=5 // pred_region
        %s1637 = ssub.s32 %s27, 2
        // Predicated region
        $region93: #{tpu_custom_call.1} parent=91 // pred_check
          %p1638 = pneg %p255
        $region94: #{tpu_custom_call.1} parent=91 // pred_check_branch
          %1640 = sbr.rel (%p1638) target = $region96
        $region95: #{tpu_custom_call.1} parent=91 // pred_region
          %s1641 = sand.u32 %s240, 1
          %s1642 = scalar_lea.sflag [#allocation6], %s1641
          %s1643 = sand.u32 %s240, 1
          %s1644 = smul.addr %s1643, 32
          %s1645 = scalar_lea.vmem [#allocation10], %s1644
          %1646 = dma.done %s1642, 512
        $region96: #{tpu_custom_call.1} parent=91 // pred_fallthru
          _
        // Predicated region
        $region97: #{tpu_custom_call.1} parent=91 // pred_check
          %p1647 = pneg %p283
        $region98: #{tpu_custom_call.1} parent=91 // pred_check_branch
          %1649 = sbr.rel (%p1647) target = $region100
        $region99: #{tpu_custom_call.1} parent=91 // pred_region
          %s1650 = sand.u32 %s33, 1
          %s1651 = scalar_lea.sflag [#allocation12], %s1650
          %s1652 = sand.u32 %s268, 1
          %s1653 = smul.addr %s1652, 32
          %s1654 = scalar_lea.vmem [#allocation11], %s1653
          %1655 = dma.done %s1651, 512
        $region100: #{tpu_custom_call.1} parent=91 // pred_fallthru
          _
      $region92: #{tpu_custom_call.1} parent=5 // pred_fallthru
        _
    $region6: #{tpu_custom_call.1} parent=1 // loop_footer
      %s31 = sadd.s32 1, %s27
    $region7: #{tpu_custom_call.1} parent=1 // loop_footer_branch
      %26 = sbr.rel target = $region3
    $region8: #{tpu_custom_call.1} parent=1 // loop_exit
      _
    %1656 = vsyncpa [#allocation5], 1
    %s1657 = scalar_lea.sflag [#allocation5], 1
    %1658 = vsyncpa %s1657, 1
    %1659 = vsyncpa [#allocation8], 1
    %1660 = vsyncpa [#allocation6], 1
    %s1661 = scalar_lea.sflag [#allocation6], 1
    %1662 = vsyncpa %s1661, 1
    %1663 = vsyncpa [#allocation12], 1
    %s1664 = scalar_lea.sflag [#allocation12], 1
    %1665 = vsyncpa %s1664, 1

</llo_original>
